<compile_context>
chip_gen: v6e
topology: v6e:2x2x1
jax: 0.10.0
libtpu: 0.0.40
codegen_flags: <defaults>
</compile_context>

<pallas_src>
import functools

import jax
import jax.numpy as jnp
from jax import lax
from jax.experimental import pallas as pl
from jax.experimental.pallas import tpu as pltpu


# ----------------------------------------------------------------------------
# Packed-parameter layout (single VMEM buffer, every section sublane-aligned).
# ----------------------------------------------------------------------------
def _round_up(n, m):
    return ((n + m - 1) // m) * m


def _pack_layout(input_size, h_size):
    """Row offsets of each parameter block inside the packed (rows, lanes) buffer."""
    gates = 4 * h_size
    lanes = max(128, _round_up(gates, 128))
    off, row = {}, 0
    for name, rows in (("wih", input_size), ("whh", h_size), ("bias", 1),
                       ("pmul", 1), ("padd", 1), ("wout", h_size), ("bout", 1)):
        off[name] = row
        row += _round_up(rows, 8)          # keep every section 8-sublane aligned
    return off, row, lanes


def _pack_weights(params, off, n_rows, lanes):
    """One-time prep: transpose, merge biases, fold the 0.5 sigmoid pre-scale
    into the i/f/o gate columns, zero-pad the output head to full lane width,
    and pack everything into one (n_rows, lanes) f32 buffer."""
    wih = jnp.asarray(params["weight_ih"], jnp.float32)     # (4H, I)
    whh = jnp.asarray(params["weight_hh"], jnp.float32)     # (4H, H)
    b = (jnp.asarray(params["bias_ih"], jnp.float32)
         + jnp.asarray(params["bias_hh"], jnp.float32))     # (4H,)
    wout = jnp.asarray(params["w_out"], jnp.float32)         # (S, H)
    bout = jnp.asarray(params["b_out"], jnp.float32)         # (S,)
    gates, _ = wih.shape
    h_size = whh.shape[1]

    # PyTorch gate order: i, f, g, o.  sigmoid(z) = 0.5*tanh(0.5*z) + 0.5, so the
    # i/f/o pre-activations are pre-scaled by 0.5 (weights AND bias) and the loop
    # only needs one tanh; the gates are recovered with post_mul / post_add.
    seg = jnp.arange(gates) // h_size                         # 0=i, 1=f, 2=g, 3=o
    pre = jnp.where(seg == 2, 1.0, 0.5).astype(jnp.float32)   # scale on pre-act
    pmul = jnp.where(seg == 2, 1.0, 0.5).astype(jnp.float32)[None, :]
    padd = jnp.where(seg == 2, 0.0, 0.5).astype(jnp.float32)[None, :]

    wb = jnp.zeros((n_rows, lanes), jnp.float32)

    def put(buf, row, block):
        r, c = block.shape
        return buf.at[row:row + r, 0:c].set(block)

    wb = put(wb, off["wih"], (wih * pre[:, None]).T)          # (I, 4H)
    wb = put(wb, off["whh"], (whh * pre[:, None]).T)          # (H, 4H)
    wb = put(wb, off["bias"], (b * pre)[None, :])             # (1, 4H)
    wb = put(wb, off["pmul"], pmul)                           # (1, 4H)
    wb = put(wb, off["padd"], padd)                           # (1, 4H)
    wb = put(wb, off["wout"], wout.T)                         # (H, S) -> lanes 0:S
    wb = put(wb, off["bout"], bout[None, :])                  # (1, S)
    return wb


# ----------------------------------------------------------------------------
# Kernel: single-layer LSTM recurrence + final Linear, fully VMEM/vreg resident.
# ----------------------------------------------------------------------------
def _lstm_kernel(h_size, off, x_ref, wb_ref, out_ref):
    """x_ref: (T, B, I) seq-major inputs; wb_ref: (rows, LANES) packed params;
    out_ref: (B, LANES) lane-dense prediction (valid in lanes 0:stateSize)."""
    T, B, I = x_ref.shape
    G = 4 * h_size

    # Hoist all parameters into values once (static, sublane-aligned slices).
    wih = wb_ref[off["wih"]:off["wih"] + I, 0:G]            # (I, 4H), 0.5-scaled i/f/o
    whh = wb_ref[off["whh"]:off["whh"] + h_size, 0:G]       # (H, 4H), 0.5-scaled i/f/o
    wout = wb_ref[off["wout"]:off["wout"] + h_size, :]      # (H, LANES), zero-padded
    bout = wb_ref[off["bout"]:off["bout"] + 1, :]           # (1, LANES), zero-padded
    # Broadcasts hoisted out of the loop (JAX does not CSE broadcast_in_dim).
    bias = jnp.broadcast_to(wb_ref[off["bias"]:off["bias"] + 1, 0:G], (B, G))
    pmul = jnp.broadcast_to(wb_ref[off["pmul"]:off["pmul"] + 1, 0:G], (B, G))
    padd = jnp.broadcast_to(wb_ref[off["padd"]:off["padd"] + 1, 0:G], (B, G))

    # Input projections are independent of the recurrence; precompute them so the
    # scheduler can hide these MXU pushes under the serial h-chain.
    xg = [jnp.dot(x_ref[t], wih, preferred_element_type=jnp.float32) + bias
          for t in range(T)]                                 # each (B, 4H)

    h = jnp.zeros((B, h_size), jnp.float32)
    c = jnp.zeros((B, h_size), jnp.float32)

    # Static unroll: the whole serial chain is visible to the LLO scheduler.
    for t in range(T):
        z = xg[t] + jnp.dot(h, whh, preferred_element_type=jnp.float32)  # (B, 4H)
        # Single EUP push per step; gates recovered with two cheap VPU ops.
        gates = jnp.tanh(z) * pmul + padd
        i_g = gates[:, 0:h_size]
        f_g = gates[:, h_size:2 * h_size]
        g_g = gates[:, 2 * h_size:3 * h_size]
        o_g = gates[:, 3 * h_size:4 * h_size]
        c = f_g * c + i_g * g_g
        h = o_g * jnp.tanh(c)

    # hiddenToState on the last hidden state; lane-dense (padded) matmul + store.
    out_ref[...] = jnp.dot(h, wout, preferred_element_type=jnp.float32) + bout


# ----------------------------------------------------------------------------
# Wrappers.
# ----------------------------------------------------------------------------
def make_forward_fns(params):
    """One-time weight prep (out of the hot path) + jitted forward functions."""
    h_size = int(params["weight_hh"].shape[1])
    input_size = int(params["weight_ih"].shape[1])
    state_size = int(params["w_out"].shape[0])
    off, n_rows, lanes = _pack_layout(input_size, h_size)
    wb = _pack_weights(params, off, n_rows, lanes)
    kernel = functools.partial(_lstm_kernel, h_size, off)

    def _call(x):
        """x: (T, B, inputSize) seq-major.  Returns (B, lanes) padded output."""
        T, B, I = x.shape
        # Batch-block of 8 when it divides B (lane/sublane friendly, lets the
        # "parallel" grid axis feed megacore / 2 TCs); otherwise one block.
        b_blk = 8 if (B > 8 and B % 8 == 0) else B
        return pl.pallas_call(
            kernel,
            out_shape=jax.ShapeDtypeStruct((B, lanes), jnp.float32),
            grid=(B // b_blk,),
            in_specs=[
                pl.BlockSpec((T, b_blk, I), lambda g: (0, g, 0)),
                pl.BlockSpec((n_rows, lanes), lambda g: (0, 0)),  # one DMA, reused
            ],
            out_specs=pl.BlockSpec((b_blk, lanes), lambda g: (g, 0)),
            compiler_params=pltpu.CompilerParams(
                dimension_semantics=("parallel",)),
        )(x, wb)

    @jax.jit
    def forward(state_seq):
        """Module-equivalent forward: (T, 1, inputSize) -> (stateSize,)."""
        return _call(state_seq)[0, :state_size]

    @jax.jit
    def forward_batched(state_seqs):
        """(T, B, inputSize) -> (B, stateSize); amortizes launch/DMA overhead."""
        return _call(state_seqs)[:, :state_size]

    return forward, forward_batched


# ----------------------------------------------------------------------------
# Pure-JAX reference (same math as torch.nn.LSTM + Linear) and param init.
# ----------------------------------------------------------------------------
def _reference_forward(state_seq, params):
    x = state_seq[:, 0, :]
    H = params["weight_hh"].shape[1]
    wih, whh = params["weight_ih"], params["weight_hh"]
    bias = params["bias_ih"] + params["bias_hh"]

    def step(carry, x_t):
        h, c = carry
        g = x_t @ wih.T + h @ whh.T + bias
        i_g = jax.nn.sigmoid(g[0:H])
        f_g = jax.nn.sigmoid(g[H:2 * H])
        g_g = jnp.tanh(g[2 * H:3 * H])
        o_g = jax.nn.sigmoid(g[3 * H:4 * H])
        c = f_g * c + i_g * g_g
        h = o_g * jnp.tanh(c)
        return (h, c), None

    h0 = jnp.zeros((H,), jnp.float32)
    c0 = jnp.zeros((H,), jnp.float32)
    (h_T, _), _ = lax.scan(step, (h0, c0), x)
    return params["w_out"] @ h_T + params["b_out"]


def init_params(key, input_size, state_size, h_size):
    """Deterministic parameter init, PyTorch shapes & U(-1/sqrt(H), 1/sqrt(H))."""
    ks = jax.random.split(key, 6)
    bound = 1.0 / jnp.sqrt(h_size)
    u = lambda k, shape: jax.random.uniform(
        k, shape, jnp.float32, minval=-bound, maxval=bound)
    return {
        "weight_ih": u(ks[0], (4 * h_size, input_size)),   # lstm.weight_ih_l0
        "weight_hh": u(ks[1], (4 * h_size, h_size)),        # lstm.weight_hh_l0
        "bias_ih":   u(ks[2], (4 * h_size,)),               # lstm.bias_ih_l0
        "bias_hh":   u(ks[3], (4 * h_size,)),               # lstm.bias_hh_l0
        "w_out":     u(ks[4], (state_size, h_size)),        # hiddenToState.weight
        "b_out":     u(ks[5], (state_size,)),               # hiddenToState.bias
    }


if __name__ == "__main__":
    # Small shapes consistent with the module: inputSize = stateSize + actionSize.
    SEQ_LEN = 8
    STATE_SIZE = 12
    ACTION_SIZE = 4
    INPUT_SIZE = STATE_SIZE + ACTION_SIZE
    H_SIZE = 32          # 4*H = 128 -> lane-aligned gate dimension

    key = jax.random.PRNGKey(0)
    k_params, k_x, k_xb = jax.random.split(key, 3)
    params = init_params(k_params, INPUT_SIZE, STATE_SIZE, H_SIZE)
    forward, forward_batched = make_forward_fns(params)   # one-time prep here

    # --- module-equivalent path: stateSeq (seq_len, batch=1, inputSize) ---------
    state_seq = jax.random.normal(k_x, (SEQ_LEN, 1, INPUT_SIZE), jnp.float32)
    pred = jax.block_until_ready(forward(state_seq))
    ref = jax.block_until_ready(_reference_forward(state_seq, params))
    assert pred.shape == (STATE_SIZE,)
    assert jnp.allclose(pred, ref, atol=1e-4, rtol=1e-4), (pred, ref)

    # --- batched path (amortizes launch/DMA; exercises the "parallel" grid) -----
    B = 16
    state_seqs = jax.random.normal(k_xb, (SEQ_LEN, B, INPUT_SIZE), jnp.float32)
    preds = jax.block_until_ready(forward_batched(state_seqs))
    refs = jnp.stack([_reference_forward(state_seqs[:, b:b + 1, :], params)
                      for b in range(B)])
    assert preds.shape == (B, STATE_SIZE)
    assert jnp.allclose(preds, refs, atol=1e-4, rtol=1e-4), (preds, refs)

    print("KERNEL_OK")
</pallas_src>

<mosaic_0001>
module attributes {stable_mosaic.version = 11 : i64} {
  func.func @_lstm_kernel(%arg0: i32, %arg1: memref<8x1x16xf32, #tpu.memory_space<vmem>>, %arg2: memref<112x128xf32, #tpu.memory_space<vmem>>, %arg3: memref<1x128xf32, #tpu.memory_space<vmem>>) attributes {dimension_semantics = [#tpu.dimension_semantics<parallel>], iteration_bounds = array<i64: 1>, scalar_prefetch = 0 : i64, scratch_operands = 0 : i64, tpu.core_type = #tpu.core_type<tc>, window_params = [{transform_indices = @transform_0, window_bounds = array<i64: 8, 1, 16>}, {pipeline_mode = #tpu.pipeline_mode<synchronous>, transform_indices = @transform_1, window_bounds = array<i64: 112, 128>}, {transform_indices = @transform_2, window_bounds = array<i64: 1, 128>}]} {
    %c0 = arith.constant 0 : index
    %c0_0 = arith.constant 0 : index
    %0 = vector.load %arg2[%c0, %c0_0] : memref<112x128xf32, #tpu.memory_space<vmem>>, vector<16x128xf32>
    %c16 = arith.constant 16 : index
    %c0_1 = arith.constant 0 : index
    %1 = vector.load %arg2[%c16, %c0_1] : memref<112x128xf32, #tpu.memory_space<vmem>>, vector<32x128xf32>
    %c72 = arith.constant 72 : index
    %c0_2 = arith.constant 0 : index
    %2 = vector.load %arg2[%c72, %c0_2] : memref<112x128xf32, #tpu.memory_space<vmem>>, vector<32x128xf32>
    %c104 = arith.constant 104 : index
    %c0_3 = arith.constant 0 : index
    %3 = vector.load %arg2[%c104, %c0_3] : memref<112x128xf32, #tpu.memory_space<vmem>>, vector<1x128xf32>
    %c48 = arith.constant 48 : index
    %c0_4 = arith.constant 0 : index
    %4 = vector.load %arg2[%c48, %c0_4] : memref<112x128xf32, #tpu.memory_space<vmem>>, vector<1x128xf32>
    %c56 = arith.constant 56 : index
    %c0_5 = arith.constant 0 : index
    %5 = vector.load %arg2[%c56, %c0_5] : memref<112x128xf32, #tpu.memory_space<vmem>>, vector<1x128xf32>
    %c64 = arith.constant 64 : index
    %c0_6 = arith.constant 0 : index
    %6 = vector.load %arg2[%c64, %c0_6] : memref<112x128xf32, #tpu.memory_space<vmem>>, vector<1x128xf32>
    %c0_7 = arith.constant 0 : index
    %c0_8 = arith.constant 0 : index
    %c0_9 = arith.constant 0 : index
    %7 = vector.load %arg1[%c0_7, %c0_8, %c0_9] : memref<8x1x16xf32, #tpu.memory_space<vmem>>, vector<1x1x16xf32>
    %8 = vector.shape_cast %7 : vector<1x1x16xf32> to vector<1x16xf32>
    %cst = arith.constant dense<0.000000e+00> : vector<1x128xf32>
    %9 = tpu.matmul %8, %0, %cst {dimension_numbers = #tpu.dot_dimension_numbers<[1], [0], [0], [1], [0, 0, 1, 1], [], []>} : vector<1x16xf32>, vector<16x128xf32>, vector<1x128xf32> -> vector<1x128xf32>
    %10 = arith.addf %9, %4 : vector<1x128xf32>
    %c1 = arith.constant 1 : index
    %c0_10 = arith.constant 0 : index
    %c0_11 = arith.constant 0 : index
    %11 = vector.load %arg1[%c1, %c0_10, %c0_11] : memref<8x1x16xf32, #tpu.memory_space<vmem>>, vector<1x1x16xf32>
    %12 = vector.shape_cast %11 : vector<1x1x16xf32> to vector<1x16xf32>
    %cst_12 = arith.constant dense<0.000000e+00> : vector<1x128xf32>
    %13 = tpu.matmul %12, %0, %cst_12 {dimension_numbers = #tpu.dot_dimension_numbers<[1], [0], [0], [1], [0, 0, 1, 1], [], []>} : vector<1x16xf32>, vector<16x128xf32>, vector<1x128xf32> -> vector<1x128xf32>
    %14 = arith.addf %13, %4 : vector<1x128xf32>
    %c2 = arith.constant 2 : index
    %c0_13 = arith.constant 0 : index
    %c0_14 = arith.constant 0 : index
    %15 = vector.load %arg1[%c2, %c0_13, %c0_14] : memref<8x1x16xf32, #tpu.memory_space<vmem>>, vector<1x1x16xf32>
    %16 = vector.shape_cast %15 : vector<1x1x16xf32> to vector<1x16xf32>
    %cst_15 = arith.constant dense<0.000000e+00> : vector<1x128xf32>
    %17 = tpu.matmul %16, %0, %cst_15 {dimension_numbers = #tpu.dot_dimension_numbers<[1], [0], [0], [1], [0, 0, 1, 1], [], []>} : vector<1x16xf32>, vector<16x128xf32>, vector<1x128xf32> -> vector<1x128xf32>
    %18 = arith.addf %17, %4 : vector<1x128xf32>
    %c3 = arith.constant 3 : index
    %c0_16 = arith.constant 0 : index
    %c0_17 = arith.constant 0 : index
    %19 = vector.load %arg1[%c3, %c0_16, %c0_17] : memref<8x1x16xf32, #tpu.memory_space<vmem>>, vector<1x1x16xf32>
    %20 = vector.shape_cast %19 : vector<1x1x16xf32> to vector<1x16xf32>
    %cst_18 = arith.constant dense<0.000000e+00> : vector<1x128xf32>
    %21 = tpu.matmul %20, %0, %cst_18 {dimension_numbers = #tpu.dot_dimension_numbers<[1], [0], [0], [1], [0, 0, 1, 1], [], []>} : vector<1x16xf32>, vector<16x128xf32>, vector<1x128xf32> -> vector<1x128xf32>
    %22 = arith.addf %21, %4 : vector<1x128xf32>
    %c4 = arith.constant 4 : index
    %c0_19 = arith.constant 0 : index
    %c0_20 = arith.constant 0 : index
    %23 = vector.load %arg1[%c4, %c0_19, %c0_20] : memref<8x1x16xf32, #tpu.memory_space<vmem>>, vector<1x1x16xf32>
    %24 = vector.shape_cast %23 : vector<1x1x16xf32> to vector<1x16xf32>
    %cst_21 = arith.constant dense<0.000000e+00> : vector<1x128xf32>
    %25 = tpu.matmul %24, %0, %cst_21 {dimension_numbers = #tpu.dot_dimension_numbers<[1], [0], [0], [1], [0, 0, 1, 1], [], []>} : vector<1x16xf32>, vector<16x128xf32>, vector<1x128xf32> -> vector<1x128xf32>
    %26 = arith.addf %25, %4 : vector<1x128xf32>
    %c5 = arith.constant 5 : index
    %c0_22 = arith.constant 0 : index
    %c0_23 = arith.constant 0 : index
    %27 = vector.load %arg1[%c5, %c0_22, %c0_23] : memref<8x1x16xf32, #tpu.memory_space<vmem>>, vector<1x1x16xf32>
    %28 = vector.shape_cast %27 : vector<1x1x16xf32> to vector<1x16xf32>
    %cst_24 = arith.constant dense<0.000000e+00> : vector<1x128xf32>
    %29 = tpu.matmul %28, %0, %cst_24 {dimension_numbers = #tpu.dot_dimension_numbers<[1], [0], [0], [1], [0, 0, 1, 1], [], []>} : vector<1x16xf32>, vector<16x128xf32>, vector<1x128xf32> -> vector<1x128xf32>
    %30 = arith.addf %29, %4 : vector<1x128xf32>
    %c6 = arith.constant 6 : index
    %c0_25 = arith.constant 0 : index
    %c0_26 = arith.constant 0 : index
    %31 = vector.load %arg1[%c6, %c0_25, %c0_26] : memref<8x1x16xf32, #tpu.memory_space<vmem>>, vector<1x1x16xf32>
    %32 = vector.shape_cast %31 : vector<1x1x16xf32> to vector<1x16xf32>
    %cst_27 = arith.constant dense<0.000000e+00> : vector<1x128xf32>
    %33 = tpu.matmul %32, %0, %cst_27 {dimension_numbers = #tpu.dot_dimension_numbers<[1], [0], [0], [1], [0, 0, 1, 1], [], []>} : vector<1x16xf32>, vector<16x128xf32>, vector<1x128xf32> -> vector<1x128xf32>
    %34 = arith.addf %33, %4 : vector<1x128xf32>
    %c7 = arith.constant 7 : index
    %c0_28 = arith.constant 0 : index
    %c0_29 = arith.constant 0 : index
    %35 = vector.load %arg1[%c7, %c0_28, %c0_29] : memref<8x1x16xf32, #tpu.memory_space<vmem>>, vector<1x1x16xf32>
    %36 = vector.shape_cast %35 : vector<1x1x16xf32> to vector<1x16xf32>
    %cst_30 = arith.constant dense<0.000000e+00> : vector<1x128xf32>
    %37 = tpu.matmul %36, %0, %cst_30 {dimension_numbers = #tpu.dot_dimension_numbers<[1], [0], [0], [1], [0, 0, 1, 1], [], []>} : vector<1x16xf32>, vector<16x128xf32>, vector<1x128xf32> -> vector<1x128xf32>
    %38 = arith.addf %37, %4 : vector<1x128xf32>
    %cst_31 = arith.constant 0.000000e+00 : f32
    %39 = vector.broadcast %cst_31 : f32 to vector<1x32xf32>
    %cst_32 = arith.constant 0.000000e+00 : f32
    %40 = vector.broadcast %cst_32 : f32 to vector<1x32xf32>
    %cst_33 = arith.constant dense<0.000000e+00> : vector<1x128xf32>
    %41 = tpu.matmul %39, %1, %cst_33 {dimension_numbers = #tpu.dot_dimension_numbers<[1], [0], [0], [1], [0, 0, 1, 1], [], []>} : vector<1x32xf32>, vector<32x128xf32>, vector<1x128xf32> -> vector<1x128xf32>
    %42 = arith.addf %10, %41 : vector<1x128xf32>
    %43 = math.tanh %42 : vector<1x128xf32>
    %44 = arith.mulf %43, %5 : vector<1x128xf32>
    %45 = arith.addf %44, %6 : vector<1x128xf32>
    %46 = vector.extract_strided_slice %45 {offsets = [0, 0], sizes = [1, 32], strides = [1, 1]} : vector<1x128xf32> to vector<1x32xf32>
    %47 = vector.extract_strided_slice %45 {offsets = [0, 32], sizes = [1, 32], strides = [1, 1]} : vector<1x128xf32> to vector<1x32xf32>
    %48 = vector.extract_strided_slice %45 {offsets = [0, 64], sizes = [1, 32], strides = [1, 1]} : vector<1x128xf32> to vector<1x32xf32>
    %49 = vector.extract_strided_slice %45 {offsets = [0, 96], sizes = [1, 32], strides = [1, 1]} : vector<1x128xf32> to vector<1x32xf32>
    %50 = arith.mulf %47, %40 : vector<1x32xf32>
    %51 = arith.mulf %46, %48 : vector<1x32xf32>
    %52 = arith.addf %50, %51 : vector<1x32xf32>
    %53 = math.tanh %52 : vector<1x32xf32>
    %54 = arith.mulf %49, %53 : vector<1x32xf32>
    %cst_34 = arith.constant dense<0.000000e+00> : vector<1x128xf32>
    %55 = tpu.matmul %54, %1, %cst_34 {dimension_numbers = #tpu.dot_dimension_numbers<[1], [0], [0], [1], [0, 0, 1, 1], [], []>} : vector<1x32xf32>, vector<32x128xf32>, vector<1x128xf32> -> vector<1x128xf32>
    %56 = arith.addf %14, %55 : vector<1x128xf32>
    %57 = math.tanh %56 : vector<1x128xf32>
    %58 = arith.mulf %57, %5 : vector<1x128xf32>
    %59 = arith.addf %58, %6 : vector<1x128xf32>
    %60 = vector.extract_strided_slice %59 {offsets = [0, 0], sizes = [1, 32], strides = [1, 1]} : vector<1x128xf32> to vector<1x32xf32>
    %61 = vector.extract_strided_slice %59 {offsets = [0, 32], sizes = [1, 32], strides = [1, 1]} : vector<1x128xf32> to vector<1x32xf32>
    %62 = vector.extract_strided_slice %59 {offsets = [0, 64], sizes = [1, 32], strides = [1, 1]} : vector<1x128xf32> to vector<1x32xf32>
    %63 = vector.extract_strided_slice %59 {offsets = [0, 96], sizes = [1, 32], strides = [1, 1]} : vector<1x128xf32> to vector<1x32xf32>
    %64 = arith.mulf %61, %52 : vector<1x32xf32>
    %65 = arith.mulf %60, %62 : vector<1x32xf32>
    %66 = arith.addf %64, %65 : vector<1x32xf32>
    %67 = math.tanh %66 : vector<1x32xf32>
    %68 = arith.mulf %63, %67 : vector<1x32xf32>
    %cst_35 = arith.constant dense<0.000000e+00> : vector<1x128xf32>
    %69 = tpu.matmul %68, %1, %cst_35 {dimension_numbers = #tpu.dot_dimension_numbers<[1], [0], [0], [1], [0, 0, 1, 1], [], []>} : vector<1x32xf32>, vector<32x128xf32>, vector<1x128xf32> -> vector<1x128xf32>
    %70 = arith.addf %18, %69 : vector<1x128xf32>
    %71 = math.tanh %70 : vector<1x128xf32>
    %72 = arith.mulf %71, %5 : vector<1x128xf32>
    %73 = arith.addf %72, %6 : vector<1x128xf32>
    %74 = vector.extract_strided_slice %73 {offsets = [0, 0], sizes = [1, 32], strides = [1, 1]} : vector<1x128xf32> to vector<1x32xf32>
    %75 = vector.extract_strided_slice %73 {offsets = [0, 32], sizes = [1, 32], strides = [1, 1]} : vector<1x128xf32> to vector<1x32xf32>
    %76 = vector.extract_strided_slice %73 {offsets = [0, 64], sizes = [1, 32], strides = [1, 1]} : vector<1x128xf32> to vector<1x32xf32>
    %77 = vector.extract_strided_slice %73 {offsets = [0, 96], sizes = [1, 32], strides = [1, 1]} : vector<1x128xf32> to vector<1x32xf32>
    %78 = arith.mulf %75, %66 : vector<1x32xf32>
    %79 = arith.mulf %74, %76 : vector<1x32xf32>
    %80 = arith.addf %78, %79 : vector<1x32xf32>
    %81 = math.tanh %80 : vector<1x32xf32>
    %82 = arith.mulf %77, %81 : vector<1x32xf32>
    %cst_36 = arith.constant dense<0.000000e+00> : vector<1x128xf32>
    %83 = tpu.matmul %82, %1, %cst_36 {dimension_numbers = #tpu.dot_dimension_numbers<[1], [0], [0], [1], [0, 0, 1, 1], [], []>} : vector<1x32xf32>, vector<32x128xf32>, vector<1x128xf32> -> vector<1x128xf32>
    %84 = arith.addf %22, %83 : vector<1x128xf32>
    %85 = math.tanh %84 : vector<1x128xf32>
    %86 = arith.mulf %85, %5 : vector<1x128xf32>
    %87 = arith.addf %86, %6 : vector<1x128xf32>
    %88 = vector.extract_strided_slice %87 {offsets = [0, 0], sizes = [1, 32], strides = [1, 1]} : vector<1x128xf32> to vector<1x32xf32>
    %89 = vector.extract_strided_slice %87 {offsets = [0, 32], sizes = [1, 32], strides = [1, 1]} : vector<1x128xf32> to vector<1x32xf32>
    %90 = vector.extract_strided_slice %87 {offsets = [0, 64], sizes = [1, 32], strides = [1, 1]} : vector<1x128xf32> to vector<1x32xf32>
    %91 = vector.extract_strided_slice %87 {offsets = [0, 96], sizes = [1, 32], strides = [1, 1]} : vector<1x128xf32> to vector<1x32xf32>
    %92 = arith.mulf %89, %80 : vector<1x32xf32>
    %93 = arith.mulf %88, %90 : vector<1x32xf32>
    %94 = arith.addf %92, %93 : vector<1x32xf32>
    %95 = math.tanh %94 : vector<1x32xf32>
    %96 = arith.mulf %91, %95 : vector<1x32xf32>
    %cst_37 = arith.constant dense<0.000000e+00> : vector<1x128xf32>
    %97 = tpu.matmul %96, %1, %cst_37 {dimension_numbers = #tpu.dot_dimension_numbers<[1], [0], [0], [1], [0, 0, 1, 1], [], []>} : vector<1x32xf32>, vector<32x128xf32>, vector<1x128xf32> -> vector<1x128xf32>
    %98 = arith.addf %26, %97 : vector<1x128xf32>
    %99 = math.tanh %98 : vector<1x128xf32>
    %100 = arith.mulf %99, %5 : vector<1x128xf32>
    %101 = arith.addf %100, %6 : vector<1x128xf32>
    %102 = vector.extract_strided_slice %101 {offsets = [0, 0], sizes = [1, 32], strides = [1, 1]} : vector<1x128xf32> to vector<1x32xf32>
    %103 = vector.extract_strided_slice %101 {offsets = [0, 32], sizes = [1, 32], strides = [1, 1]} : vector<1x128xf32> to vector<1x32xf32>
    %104 = vector.extract_strided_slice %101 {offsets = [0, 64], sizes = [1, 32], strides = [1, 1]} : vector<1x128xf32> to vector<1x32xf32>
    %105 = vector.extract_strided_slice %101 {offsets = [0, 96], sizes = [1, 32], strides = [1, 1]} : vector<1x128xf32> to vector<1x32xf32>
    %106 = arith.mulf %103, %94 : vector<1x32xf32>
    %107 = arith.mulf %102, %104 : vector<1x32xf32>
    %108 = arith.addf %106, %107 : vector<1x32xf32>
    %109 = math.tanh %108 : vector<1x32xf32>
    %110 = arith.mulf %105, %109 : vector<1x32xf32>
    %cst_38 = arith.constant dense<0.000000e+00> : vector<1x128xf32>
    %111 = tpu.matmul %110, %1, %cst_38 {dimension_numbers = #tpu.dot_dimension_numbers<[1], [0], [0], [1], [0, 0, 1, 1], [], []>} : vector<1x32xf32>, vector<32x128xf32>, vector<1x128xf32> -> vector<1x128xf32>
    %112 = arith.addf %30, %111 : vector<1x128xf32>
    %113 = math.tanh %112 : vector<1x128xf32>
    %114 = arith.mulf %113, %5 : vector<1x128xf32>
    %115 = arith.addf %114, %6 : vector<1x128xf32>
    %116 = vector.extract_strided_slice %115 {offsets = [0, 0], sizes = [1, 32], strides = [1, 1]} : vector<1x128xf32> to vector<1x32xf32>
    %117 = vector.extract_strided_slice %115 {offsets = [0, 32], sizes = [1, 32], strides = [1, 1]} : vector<1x128xf32> to vector<1x32xf32>
    %118 = vector.extract_strided_slice %115 {offsets = [0, 64], sizes = [1, 32], strides = [1, 1]} : vector<1x128xf32> to vector<1x32xf32>
    %119 = vector.extract_strided_slice %115 {offsets = [0, 96], sizes = [1, 32], strides = [1, 1]} : vector<1x128xf32> to vector<1x32xf32>
    %120 = arith.mulf %117, %108 : vector<1x32xf32>
    %121 = arith.mulf %116, %118 : vector<1x32xf32>
    %122 = arith.addf %120, %121 : vector<1x32xf32>
    %123 = math.tanh %122 : vector<1x32xf32>
    %124 = arith.mulf %119, %123 : vector<1x32xf32>
    %cst_39 = arith.constant dense<0.000000e+00> : vector<1x128xf32>
    %125 = tpu.matmul %124, %1, %cst_39 {dimension_numbers = #tpu.dot_dimension_numbers<[1], [0], [0], [1], [0, 0, 1, 1], [], []>} : vector<1x32xf32>, vector<32x128xf32>, vector<1x128xf32> -> vector<1x128xf32>
    %126 = arith.addf %34, %125 : vector<1x128xf32>
    %127 = math.tanh %126 : vector<1x128xf32>
    %128 = arith.mulf %127, %5 : vector<1x128xf32>
    %129 = arith.addf %128, %6 : vector<1x128xf32>
    %130 = vector.extract_strided_slice %129 {offsets = [0, 0], sizes = [1, 32], strides = [1, 1]} : vector<1x128xf32> to vector<1x32xf32>
    %131 = vector.extract_strided_slice %129 {offsets = [0, 32], sizes = [1, 32], strides = [1, 1]} : vector<1x128xf32> to vector<1x32xf32>
    %132 = vector.extract_strided_slice %129 {offsets = [0, 64], sizes = [1, 32], strides = [1, 1]} : vector<1x128xf32> to vector<1x32xf32>
    %133 = vector.extract_strided_slice %129 {offsets = [0, 96], sizes = [1, 32], strides = [1, 1]} : vector<1x128xf32> to vector<1x32xf32>
    %134 = arith.mulf %131, %122 : vector<1x32xf32>
    %135 = arith.mulf %130, %132 : vector<1x32xf32>
    %136 = arith.addf %134, %135 : vector<1x32xf32>
    %137 = math.tanh %136 : vector<1x32xf32>
    %138 = arith.mulf %133, %137 : vector<1x32xf32>
    %cst_40 = arith.constant dense<0.000000e+00> : vector<1x128xf32>
    %139 = tpu.matmul %138, %1, %cst_40 {dimension_numbers = #tpu.dot_dimension_numbers<[1], [0], [0], [1], [0, 0, 1, 1], [], []>} : vector<1x32xf32>, vector<32x128xf32>, vector<1x128xf32> -> vector<1x128xf32>
    %140 = arith.addf %38, %139 : vector<1x128xf32>
    %141 = math.tanh %140 : vector<1x128xf32>
    %142 = arith.mulf %141, %5 : vector<1x128xf32>
    %143 = arith.addf %142, %6 : vector<1x128xf32>
    %144 = vector.extract_strided_slice %143 {offsets = [0, 0], sizes = [1, 32], strides = [1, 1]} : vector<1x128xf32> to vector<1x32xf32>
    %145 = vector.extract_strided_slice %143 {offsets = [0, 32], sizes = [1, 32], strides = [1, 1]} : vector<1x128xf32> to vector<1x32xf32>
    %146 = vector.extract_strided_slice %143 {offsets = [0, 64], sizes = [1, 32], strides = [1, 1]} : vector<1x128xf32> to vector<1x32xf32>
    %147 = vector.extract_strided_slice %143 {offsets = [0, 96], sizes = [1, 32], strides = [1, 1]} : vector<1x128xf32> to vector<1x32xf32>
    %148 = arith.mulf %145, %136 : vector<1x32xf32>
    %149 = arith.mulf %144, %146 : vector<1x32xf32>
    %150 = arith.addf %148, %149 : vector<1x32xf32>
    %151 = math.tanh %150 : vector<1x32xf32>
    %152 = arith.mulf %147, %151 : vector<1x32xf32>
    %cst_41 = arith.constant dense<0.000000e+00> : vector<1x128xf32>
    %153 = tpu.matmul %152, %2, %cst_41 {dimension_numbers = #tpu.dot_dimension_numbers<[1], [0], [0], [1], [0, 0, 1, 1], [], []>} : vector<1x32xf32>, vector<32x128xf32>, vector<1x128xf32> -> vector<1x128xf32>
    %154 = arith.addf %153, %3 : vector<1x128xf32>
    %c0_42 = arith.constant 0 : index
    %c0_43 = arith.constant 0 : index
    %155 = vector.load %arg3[%c0_42, %c0_43] : memref<1x128xf32, #tpu.memory_space<vmem>>, vector<1x128xf32>
    tpu.vector_store %arg3[%c0_42, %c0_43], %154 {strides = array<i32>} : memref<1x128xf32, #tpu.memory_space<vmem>>, vector<1x128xf32>,
    return
  }
  func.func @transform_0(%arg0: i32) -> (i32, i32, i32) {
    %c0_i32 = arith.constant 0 : i32
    %c0_i32_0 = arith.constant 0 : i32
    %c0_i32_1 = arith.constant 0 : i32
    return %c0_i32, %arg0, %c0_i32_0 : i32, i32, i32
  }
  func.func @transform_1(%arg0: i32) -> (i32, i32) {
    %c0_i32 = arith.constant 0 : i32
    %c0_i32_0 = arith.constant 0 : i32
    %c0_i32_1 = arith.constant 0 : i32
    return %c0_i32, %c0_i32_0 : i32, i32
  }
  func.func @transform_2(%arg0: i32) -> (i32, i32) {
    %c0_i32 = arith.constant 0 : i32
    %c0_i32_0 = arith.constant 0 : i32
    return %arg0, %c0_i32 : i32, i32
  }
}

</mosaic_0001>

<llo_original>
// kernel: forward.1
$region0: #{forward.1}
  #allocation0 [shape = 'u32[]', space=smem, size = 0x4, offset = 0x4, fixed_abs, tag = 'smem constant byte address 0x4 - core index']
  #allocation1 [shape = 'u32[144,128]{1,0:T(1,128)}', space=vmem, size = 0x12000, scoped, tag = 'internal scratch']
  %s0 = inlined_call_operand.hbm [shape: f32[8,1,16], index: 0, kind: input, shape index: {}]
  %s1 = inlined_call_operand.hbm [shape: f32[112,128], index: 1, kind: input, shape index: {}]
  %s2 = inlined_call_operand.vmem [shape: f32[1,128], index: 2, kind: output, shape index: {}]
  %s3 = sld [smem:[#allocation0]]
  $region26: #{forward.1} parent=0
    _
  %s5 = ssub.s32 1, %s3
  %s6 = scalar_select 0, %s5, %s3
  $region1: #{forward.1} parent=0
    #allocation2 [shape = 'u8[4096]{0}', space=vmem, size = 0x1000, scoped, tag = 'input window, operand 0, single buffered']
    #allocation3 [shape = 's32[1]{0}', space=sflag, size = 0x4, scoped, tag = 'scoped memory for forward.1']
    #allocation4 [shape = 'u8[57344]{0}', space=vmem, size = 0xe000, scoped, tag = 'input window, operand 1, single buffered']
    #allocation5 [shape = 's32[1]{0}', space=sflag, size = 0x4, scoped, tag = 'scoped memory for forward.1']
    %7 = vsyncpa [#allocation3], 0
    %8 = vsyncpa [#allocation5], 0
    // Predicated region
    $region2: #{forward.1} parent=1 // pred_check
      _
    $region3: #{forward.1} parent=1 // pred_check_branch
      %10 = sbr.rel (0) target = $region5
    $region4: #{forward.1} parent=1 // pred_region
      %s12 = ssub.s32 128, 128
      %13 = vsyncadd [#allocation3], %s12
      %s14 = sshll.u32 [#allocation2], 4
      %s15 = int_to_ptr.vmem [resolvable:$true] %s14
      %20 = dma.hbm_to_vmem [thread:$0]  %s0, 128, %s15, [#allocation3], 16, 16, 1
    $region5: #{forward.1} parent=1 // pred_fallthru
      _
    // Predicated region
    $region6: #{forward.1} parent=1 // pred_check
      _
    $region7: #{forward.1} parent=1 // pred_check_branch
      %22 = sbr.rel (0) target = $region9
    $region8: #{forward.1} parent=1 // pred_region
      %s24 = ssub.s32 1792, 1792
      %25 = vsyncadd [#allocation5], %s24
      %s26 = sshll.u32 [#allocation4], 4
      %s27 = int_to_ptr.vmem [resolvable:$true] %s26
      %32 = dma.hbm_to_vmem [thread:$0]  %s1, 1792, %s27, [#allocation5], 128, 128, 8
    $region9: #{forward.1} parent=1 // pred_fallthru
      _
    // Predicated region
    $region10: #{forward.1} parent=1 // pred_check
      _
    $region11: #{forward.1} parent=1 // pred_check_branch
      %34 = sbr.rel (0) target = $region13
    $region12: #{forward.1} parent=1 // pred_region
      %35 = dma.done [#allocation3], 128
    $region13: #{forward.1} parent=1 // pred_fallthru
      _
    // Predicated region
    $region14: #{forward.1} parent=1 // pred_check
      _
    $region15: #{forward.1} parent=1 // pred_check_branch
      %37 = sbr.rel (0) target = $region17
    $region16: #{forward.1} parent=1 // pred_region
      %38 = dma.done [#allocation5], 1792
    $region17: #{forward.1} parent=1 // pred_fallthru
      _
    %v39 = vld [vmem:[#allocation4] sm:$0xff]
    %v40 = vld [vmem:[#allocation4 + $0x8] sm:$0xff]
    %v41 = vld [vmem:[#allocation4 + $0x10] sm:$0xff]
    %v42 = vld [vmem:[#allocation4 + $0x18] sm:$0xff]
    %v43 = vld [vmem:[#allocation4 + $0x20] sm:$0xff]
    %v44 = vld [vmem:[#allocation4 + $0x28] sm:$0xff]
    %v45 = vld [vmem:[#allocation4 + $0x48] sm:$0xff]
    %v46 = vld [vmem:[#allocation4 + $0x50] sm:$0xff]
    %v47 = vld [vmem:[#allocation4 + $0x58] sm:$0xff]
    %v48 = vld [vmem:[#allocation4 + $0x60] sm:$0xff]
    %v49 = vld [vmem:[#allocation4 + $0x68] sm:$0x1]
    %v50 = vld [vmem:[#allocation4 + $0x30] sm:$0x1]
    %v51 = vld [vmem:[#allocation4 + $0x38] sm:$0x1]
    %v52 = vld [vmem:[#allocation4 + $0x40] sm:$0x1]
    %v53 = vld [vmem:[#allocation2] sm:$0x1]
    %vm54 = vcmask 130048
    %v56 = vsel %vm54, %v53, 0
    %58 = vmatprep.subr.mxu0 0.0
    %59 = vmatpush1.msra.mxu0 0.0
    %60 = vmatprep.subr.mxu0 0.0
    %61 = vmatpush1.msra.mxu0 0.0
    %62 = vmatprep.subr.mxu0 0.0
    %63 = vmatpush1.msra.mxu0 0.0
    %64 = vmatprep.subr.mxu0 0.0
    %65 = vmatpush1.msra.mxu0 0.0
    %66 = vmatprep.subr.mxu0 0.0
    %67 = vmatpush1.msra.mxu0 0.0
    %68 = vmatprep.subr.mxu0 0.0
    %69 = vmatpush1.msra.mxu0 0.0
    %70 = vmatprep.subr.mxu0 0.0
    %71 = vmatpush1.msra.mxu0 0.0
    %72 = vmatprep.subr.mxu0 0.0
    %73 = vmatpush1.msra.mxu0 0.0
    %74 = vmatprep.subr.mxu0 0.0
    %75 = vmatpush1.msra.mxu0 0.0
    %76 = vmatprep.subr.mxu0 0.0
    %77 = vmatpush1.msra.mxu0 0.0
    %78 = vmatprep.subr.mxu0 0.0
    %79 = vmatpush1.msra.mxu0 0.0
    %80 = vmatprep.subr.mxu0 0.0
    %81 = vmatpush1.msra.mxu0 0.0
    %82 = vmatprep.subr.mxu0 0.0
    %83 = vmatpush1.msra.mxu0 0.0
    %84 = vmatprep.subr.mxu0 0.0
    %85 = vmatpush1.msra.mxu0 0.0
    %86 = vmatprep.subr.mxu0 0.0
    %87 = vmatpush1.msra.mxu0 %v40
    %88 = vmatprep.subr.mxu0 0.0
    %89 = vmatpush1.msra.mxu0 %v39
    %90 = vmatprep.subr.mxu0 0.0
    %91 = vmatpush2.msra.mxu0 0.0
    %92 = vmatprep.subr.mxu0 0.0
    %93 = vmatpush2.msra.mxu0 0.0
    %94 = vmatprep.subr.mxu0 0.0
    %95 = vmatpush2.msra.mxu0 0.0
    %96 = vmatprep.subr.mxu0 0.0
    %97 = vmatpush2.msra.mxu0 0.0
    %98 = vmatprep.subr.mxu0 0.0
    %99 = vmatpush2.msra.mxu0 0.0
    %100 = vmatprep.subr.mxu0 0.0
    %101 = vmatpush2.msra.mxu0 0.0
    %102 = vmatprep.subr.mxu0 0.0
    %103 = vmatpush2.msra.mxu0 0.0
    %104 = vmatprep.subr.mxu0 0.0
    %105 = vmatpush2.msra.mxu0 0.0
    %106 = vmatprep.subr.mxu0 0.0
    %107 = vmatpush2.msra.mxu0 0.0
    %108 = vmatprep.subr.mxu0 0.0
    %109 = vmatpush2.msra.mxu0 0.0
    %110 = vmatprep.subr.mxu0 0.0
    %111 = vmatpush2.msra.mxu0 0.0
    %112 = vmatprep.subr.mxu0 0.0
    %113 = vmatpush2.msra.mxu0 0.0
    %114 = vmatprep.subr.mxu0 0.0
    %115 = vmatpush2.msra.mxu0 0.0
    %116 = vmatprep.subr.mxu0 0.0
    %117 = vmatpush2.msra.mxu0 0.0
    %118 = vmatprep.subr.mxu0 0.0
    %119 = vmatpush2.msra.mxu0 0.0
    %120 = vmatprep.subr.mxu0 0.0
    %121 = vmatpush2.msra.mxu0 0.0
    %122 = vmatprep.mubr.f32.mxu0 0.0
    %123 = vmatmul.mubr.f32.gmra.mxu0 %v56
    %v124 = vpop.f32.mrf.mxu0
    %v125 = vadd.f32 %v50, %v124
    %v126 = vpop.f32.mrf.mxu0
    %127 = vdwg.mxu0
    %s128 = scalar_lea.vmem [#allocation2], 1
    %v129 = vld [vmem:[%s128] sm:$0x1]
    %v131 = vsel %vm54, %v129, 0
    %133 = vmatprep.subr.mxu0 0.0
    %134 = vmatpush1.msra.mxu0 0.0
    %135 = vmatprep.subr.mxu0 0.0
    %136 = vmatpush1.msra.mxu0 0.0
    %137 = vmatprep.subr.mxu0 0.0
    %138 = vmatpush1.msra.mxu0 0.0
    %139 = vmatprep.subr.mxu0 0.0
    %140 = vmatpush1.msra.mxu0 0.0
    %141 = vmatprep.subr.mxu0 0.0
    %142 = vmatpush1.msra.mxu0 0.0
    %143 = vmatprep.subr.mxu0 0.0
    %144 = vmatpush1.msra.mxu0 0.0
    %145 = vmatprep.subr.mxu0 0.0
    %146 = vmatpush1.msra.mxu0 0.0
    %147 = vmatprep.subr.mxu0 0.0
    %148 = vmatpush1.msra.mxu0 0.0
    %149 = vmatprep.subr.mxu0 0.0
    %150 = vmatpush1.msra.mxu0 0.0
    %151 = vmatprep.subr.mxu0 0.0
    %152 = vmatpush1.msra.mxu0 0.0
    %153 = vmatprep.subr.mxu0 0.0
    %154 = vmatpush1.msra.mxu0 0.0
    %155 = vmatprep.subr.mxu0 0.0
    %156 = vmatpush1.msra.mxu0 0.0
    %157 = vmatprep.subr.mxu0 0.0
    %158 = vmatpush1.msra.mxu0 0.0
    %159 = vmatprep.subr.mxu0 0.0
    %160 = vmatpush1.msra.mxu0 0.0
    %161 = vmatprep.subr.mxu0 0.0
    %162 = vmatpush1.msra.mxu0 %v40
    %163 = vmatprep.subr.mxu0 0.0
    %164 = vmatpush1.msra.mxu0 %v39
    %165 = vmatprep.subr.mxu0 0.0
    %166 = vmatpush2.msra.mxu0 0.0
    %167 = vmatprep.subr.mxu0 0.0
    %168 = vmatpush2.msra.mxu0 0.0
    %169 = vmatprep.subr.mxu0 0.0
    %170 = vmatpush2.msra.mxu0 0.0
    %171 = vmatprep.subr.mxu0 0.0
    %172 = vmatpush2.msra.mxu0 0.0
    %173 = vmatprep.subr.mxu0 0.0
    %174 = vmatpush2.msra.mxu0 0.0
    %175 = vmatprep.subr.mxu0 0.0
    %176 = vmatpush2.msra.mxu0 0.0
    %177 = vmatprep.subr.mxu0 0.0
    %178 = vmatpush2.msra.mxu0 0.0
    %179 = vmatprep.subr.mxu0 0.0
    %180 = vmatpush2.msra.mxu0 0.0
    %181 = vmatprep.subr.mxu0 0.0
    %182 = vmatpush2.msra.mxu0 0.0
    %183 = vmatprep.subr.mxu0 0.0
    %184 = vmatpush2.msra.mxu0 0.0
    %185 = vmatprep.subr.mxu0 0.0
    %186 = vmatpush2.msra.mxu0 0.0
    %187 = vmatprep.subr.mxu0 0.0
    %188 = vmatpush2.msra.mxu0 0.0
    %189 = vmatprep.subr.mxu0 0.0
    %190 = vmatpush2.msra.mxu0 0.0
    %191 = vmatprep.subr.mxu0 0.0
    %192 = vmatpush2.msra.mxu0 0.0
    %193 = vmatprep.subr.mxu0 0.0
    %194 = vmatpush2.msra.mxu0 0.0
    %195 = vmatprep.subr.mxu0 0.0
    %196 = vmatpush2.msra.mxu0 0.0
    %197 = vmatprep.mubr.f32.mxu0 0.0
    %198 = vmatmul.mubr.f32.gmra.mxu0 %v131
    %v199 = vpop.f32.mrf.mxu0
    %v200 = vadd.f32 %v50, %v199
    %v201 = vpop.f32.mrf.mxu0
    %202 = vdwg.mxu0
    %s203 = scalar_lea.vmem [#allocation2], 2
    %v204 = vld [vmem:[%s203] sm:$0x1]
    %v206 = vsel %vm54, %v204, 0
    %208 = vmatprep.subr.mxu0 0.0
    %209 = vmatpush1.msra.mxu0 0.0
    %210 = vmatprep.subr.mxu0 0.0
    %211 = vmatpush1.msra.mxu0 0.0
    %212 = vmatprep.subr.mxu0 0.0
    %213 = vmatpush1.msra.mxu0 0.0
    %214 = vmatprep.subr.mxu0 0.0
    %215 = vmatpush1.msra.mxu0 0.0
    %216 = vmatprep.subr.mxu0 0.0
    %217 = vmatpush1.msra.mxu0 0.0
    %218 = vmatprep.subr.mxu0 0.0
    %219 = vmatpush1.msra.mxu0 0.0
    %220 = vmatprep.subr.mxu0 0.0
    %221 = vmatpush1.msra.mxu0 0.0
    %222 = vmatprep.subr.mxu0 0.0
    %223 = vmatpush1.msra.mxu0 0.0
    %224 = vmatprep.subr.mxu0 0.0
    %225 = vmatpush1.msra.mxu0 0.0
    %226 = vmatprep.subr.mxu0 0.0
    %227 = vmatpush1.msra.mxu0 0.0
    %228 = vmatprep.subr.mxu0 0.0
    %229 = vmatpush1.msra.mxu0 0.0
    %230 = vmatprep.subr.mxu0 0.0
    %231 = vmatpush1.msra.mxu0 0.0
    %232 = vmatprep.subr.mxu0 0.0
    %233 = vmatpush1.msra.mxu0 0.0
    %234 = vmatprep.subr.mxu0 0.0
    %235 = vmatpush1.msra.mxu0 0.0
    %236 = vmatprep.subr.mxu0 0.0
    %237 = vmatpush1.msra.mxu0 %v40
    %238 = vmatprep.subr.mxu0 0.0
    %239 = vmatpush1.msra.mxu0 %v39
    %240 = vmatprep.subr.mxu0 0.0
    %241 = vmatpush2.msra.mxu0 0.0
    %242 = vmatprep.subr.mxu0 0.0
    %243 = vmatpush2.msra.mxu0 0.0
    %244 = vmatprep.subr.mxu0 0.0
    %245 = vmatpush2.msra.mxu0 0.0
    %246 = vmatprep.subr.mxu0 0.0
    %247 = vmatpush2.msra.mxu0 0.0
    %248 = vmatprep.subr.mxu0 0.0
    %249 = vmatpush2.msra.mxu0 0.0
    %250 = vmatprep.subr.mxu0 0.0
    %251 = vmatpush2.msra.mxu0 0.0
    %252 = vmatprep.subr.mxu0 0.0
    %253 = vmatpush2.msra.mxu0 0.0
    %254 = vmatprep.subr.mxu0 0.0
    %255 = vmatpush2.msra.mxu0 0.0
    %256 = vmatprep.subr.mxu0 0.0
    %257 = vmatpush2.msra.mxu0 0.0
    %258 = vmatprep.subr.mxu0 0.0
    %259 = vmatpush2.msra.mxu0 0.0
    %260 = vmatprep.subr.mxu0 0.0
    %261 = vmatpush2.msra.mxu0 0.0
    %262 = vmatprep.subr.mxu0 0.0
    %263 = vmatpush2.msra.mxu0 0.0
    %264 = vmatprep.subr.mxu0 0.0
    %265 = vmatpush2.msra.mxu0 0.0
    %266 = vmatprep.subr.mxu0 0.0
    %267 = vmatpush2.msra.mxu0 0.0
    %268 = vmatprep.subr.mxu0 0.0
    %269 = vmatpush2.msra.mxu0 0.0
    %270 = vmatprep.subr.mxu0 0.0
    %271 = vmatpush2.msra.mxu0 0.0
    %272 = vmatprep.mubr.f32.mxu0 0.0
    %273 = vmatmul.mubr.f32.gmra.mxu0 %v206
    %v274 = vpop.f32.mrf.mxu0
    %v275 = vadd.f32 %v50, %v274
    %v276 = vpop.f32.mrf.mxu0
    %277 = vdwg.mxu0
    %s278 = scalar_lea.vmem [#allocation2], 3
    %v279 = vld [vmem:[%s278] sm:$0x1]
    %v281 = vsel %vm54, %v279, 0
    %283 = vmatprep.subr.mxu0 0.0
    %284 = vmatpush1.msra.mxu0 0.0
    %285 = vmatprep.subr.mxu0 0.0
    %286 = vmatpush1.msra.mxu0 0.0
    %287 = vmatprep.subr.mxu0 0.0
    %288 = vmatpush1.msra.mxu0 0.0
    %289 = vmatprep.subr.mxu0 0.0
    %290 = vmatpush1.msra.mxu0 0.0
    %291 = vmatprep.subr.mxu0 0.0
    %292 = vmatpush1.msra.mxu0 0.0
    %293 = vmatprep.subr.mxu0 0.0
    %294 = vmatpush1.msra.mxu0 0.0
    %295 = vmatprep.subr.mxu0 0.0
    %296 = vmatpush1.msra.mxu0 0.0
    %297 = vmatprep.subr.mxu0 0.0
    %298 = vmatpush1.msra.mxu0 0.0
    %299 = vmatprep.subr.mxu0 0.0
    %300 = vmatpush1.msra.mxu0 0.0
    %301 = vmatprep.subr.mxu0 0.0
    %302 = vmatpush1.msra.mxu0 0.0
    %303 = vmatprep.subr.mxu0 0.0
    %304 = vmatpush1.msra.mxu0 0.0
    %305 = vmatprep.subr.mxu0 0.0
    %306 = vmatpush1.msra.mxu0 0.0
    %307 = vmatprep.subr.mxu0 0.0
    %308 = vmatpush1.msra.mxu0 0.0
    %309 = vmatprep.subr.mxu0 0.0
    %310 = vmatpush1.msra.mxu0 0.0
    %311 = vmatprep.subr.mxu0 0.0
    %312 = vmatpush1.msra.mxu0 %v40
    %313 = vmatprep.subr.mxu0 0.0
    %314 = vmatpush1.msra.mxu0 %v39
    %315 = vmatprep.subr.mxu0 0.0
    %316 = vmatpush2.msra.mxu0 0.0
    %317 = vmatprep.subr.mxu0 0.0
    %318 = vmatpush2.msra.mxu0 0.0
    %319 = vmatprep.subr.mxu0 0.0
    %320 = vmatpush2.msra.mxu0 0.0
    %321 = vmatprep.subr.mxu0 0.0
    %322 = vmatpush2.msra.mxu0 0.0
    %323 = vmatprep.subr.mxu0 0.0
    %324 = vmatpush2.msra.mxu0 0.0
    %325 = vmatprep.subr.mxu0 0.0
    %326 = vmatpush2.msra.mxu0 0.0
    %327 = vmatprep.subr.mxu0 0.0
    %328 = vmatpush2.msra.mxu0 0.0
    %329 = vmatprep.subr.mxu0 0.0
    %330 = vmatpush2.msra.mxu0 0.0
    %331 = vmatprep.subr.mxu0 0.0
    %332 = vmatpush2.msra.mxu0 0.0
    %333 = vmatprep.subr.mxu0 0.0
    %334 = vmatpush2.msra.mxu0 0.0
    %335 = vmatprep.subr.mxu0 0.0
    %336 = vmatpush2.msra.mxu0 0.0
    %337 = vmatprep.subr.mxu0 0.0
    %338 = vmatpush2.msra.mxu0 0.0
    %339 = vmatprep.subr.mxu0 0.0
    %340 = vmatpush2.msra.mxu0 0.0
    %341 = vmatprep.subr.mxu0 0.0
    %342 = vmatpush2.msra.mxu0 0.0
    %343 = vmatprep.subr.mxu0 0.0
    %344 = vmatpush2.msra.mxu0 0.0
    %345 = vmatprep.subr.mxu0 0.0
    %346 = vmatpush2.msra.mxu0 0.0
    %347 = vmatprep.mubr.f32.mxu0 0.0
    %348 = vmatmul.mubr.f32.gmra.mxu0 %v281
    %v349 = vpop.f32.mrf.mxu0
    %v350 = vadd.f32 %v50, %v349
    %v351 = vpop.f32.mrf.mxu0
    %352 = vdwg.mxu0
    %s353 = scalar_lea.vmem [#allocation2], 4
    %v354 = vld [vmem:[%s353] sm:$0x1]
    %v356 = vsel %vm54, %v354, 0
    %358 = vmatprep.subr.mxu0 0.0
    %359 = vmatpush1.msra.mxu0 0.0
    %360 = vmatprep.subr.mxu0 0.0
    %361 = vmatpush1.msra.mxu0 0.0
    %362 = vmatprep.subr.mxu0 0.0
    %363 = vmatpush1.msra.mxu0 0.0
    %364 = vmatprep.subr.mxu0 0.0
    %365 = vmatpush1.msra.mxu0 0.0
    %366 = vmatprep.subr.mxu0 0.0
    %367 = vmatpush1.msra.mxu0 0.0
    %368 = vmatprep.subr.mxu0 0.0
    %369 = vmatpush1.msra.mxu0 0.0
    %370 = vmatprep.subr.mxu0 0.0
    %371 = vmatpush1.msra.mxu0 0.0
    %372 = vmatprep.subr.mxu0 0.0
    %373 = vmatpush1.msra.mxu0 0.0
    %374 = vmatprep.subr.mxu0 0.0
    %375 = vmatpush1.msra.mxu0 0.0
    %376 = vmatprep.subr.mxu0 0.0
    %377 = vmatpush1.msra.mxu0 0.0
    %378 = vmatprep.subr.mxu0 0.0
    %379 = vmatpush1.msra.mxu0 0.0
    %380 = vmatprep.subr.mxu0 0.0
    %381 = vmatpush1.msra.mxu0 0.0
    %382 = vmatprep.subr.mxu0 0.0
    %383 = vmatpush1.msra.mxu0 0.0
    %384 = vmatprep.subr.mxu0 0.0
    %385 = vmatpush1.msra.mxu0 0.0
    %386 = vmatprep.subr.mxu0 0.0
    %387 = vmatpush1.msra.mxu0 %v40
    %388 = vmatprep.subr.mxu0 0.0
    %389 = vmatpush1.msra.mxu0 %v39
    %390 = vmatprep.subr.mxu0 0.0
    %391 = vmatpush2.msra.mxu0 0.0
    %392 = vmatprep.subr.mxu0 0.0
    %393 = vmatpush2.msra.mxu0 0.0
    %394 = vmatprep.subr.mxu0 0.0
    %395 = vmatpush2.msra.mxu0 0.0
    %396 = vmatprep.subr.mxu0 0.0
    %397 = vmatpush2.msra.mxu0 0.0
    %398 = vmatprep.subr.mxu0 0.0
    %399 = vmatpush2.msra.mxu0 0.0
    %400 = vmatprep.subr.mxu0 0.0
    %401 = vmatpush2.msra.mxu0 0.0
    %402 = vmatprep.subr.mxu0 0.0
    %403 = vmatpush2.msra.mxu0 0.0
    %404 = vmatprep.subr.mxu0 0.0
    %405 = vmatpush2.msra.mxu0 0.0
    %406 = vmatprep.subr.mxu0 0.0
    %407 = vmatpush2.msra.mxu0 0.0
    %408 = vmatprep.subr.mxu0 0.0
    %409 = vmatpush2.msra.mxu0 0.0
    %410 = vmatprep.subr.mxu0 0.0
    %411 = vmatpush2.msra.mxu0 0.0
    %412 = vmatprep.subr.mxu0 0.0
    %413 = vmatpush2.msra.mxu0 0.0
    %414 = vmatprep.subr.mxu0 0.0
    %415 = vmatpush2.msra.mxu0 0.0
    %416 = vmatprep.subr.mxu0 0.0
    %417 = vmatpush2.msra.mxu0 0.0
    %418 = vmatprep.subr.mxu0 0.0
    %419 = vmatpush2.msra.mxu0 0.0
    %420 = vmatprep.subr.mxu0 0.0
    %421 = vmatpush2.msra.mxu0 0.0
    %422 = vmatprep.mubr.f32.mxu0 0.0
    %423 = vmatmul.mubr.f32.gmra.mxu0 %v356
    %v424 = vpop.f32.mrf.mxu0
    %v425 = vadd.f32 %v50, %v424
    %v426 = vpop.f32.mrf.mxu0
    %427 = vdwg.mxu0
    %s428 = scalar_lea.vmem [#allocation2], 5
    %v429 = vld [vmem:[%s428] sm:$0x1]
    %v431 = vsel %vm54, %v429, 0
    %433 = vmatprep.subr.mxu0 0.0
    %434 = vmatpush1.msra.mxu0 0.0
    %435 = vmatprep.subr.mxu0 0.0
    %436 = vmatpush1.msra.mxu0 0.0
    %437 = vmatprep.subr.mxu0 0.0
    %438 = vmatpush1.msra.mxu0 0.0
    %439 = vmatprep.subr.mxu0 0.0
    %440 = vmatpush1.msra.mxu0 0.0
    %441 = vmatprep.subr.mxu0 0.0
    %442 = vmatpush1.msra.mxu0 0.0
    %443 = vmatprep.subr.mxu0 0.0
    %444 = vmatpush1.msra.mxu0 0.0
    %445 = vmatprep.subr.mxu0 0.0
    %446 = vmatpush1.msra.mxu0 0.0
    %447 = vmatprep.subr.mxu0 0.0
    %448 = vmatpush1.msra.mxu0 0.0
    %449 = vmatprep.subr.mxu0 0.0
    %450 = vmatpush1.msra.mxu0 0.0
    %451 = vmatprep.subr.mxu0 0.0
    %452 = vmatpush1.msra.mxu0 0.0
    %453 = vmatprep.subr.mxu0 0.0
    %454 = vmatpush1.msra.mxu0 0.0
    %455 = vmatprep.subr.mxu0 0.0
    %456 = vmatpush1.msra.mxu0 0.0
    %457 = vmatprep.subr.mxu0 0.0
    %458 = vmatpush1.msra.mxu0 0.0
    %459 = vmatprep.subr.mxu0 0.0
    %460 = vmatpush1.msra.mxu0 0.0
    %461 = vmatprep.subr.mxu0 0.0
    %462 = vmatpush1.msra.mxu0 %v40
    %463 = vmatprep.subr.mxu0 0.0
    %464 = vmatpush1.msra.mxu0 %v39
    %465 = vmatprep.subr.mxu0 0.0
    %466 = vmatpush2.msra.mxu0 0.0
    %467 = vmatprep.subr.mxu0 0.0
    %468 = vmatpush2.msra.mxu0 0.0
    %469 = vmatprep.subr.mxu0 0.0
    %470 = vmatpush2.msra.mxu0 0.0
    %471 = vmatprep.subr.mxu0 0.0
    %472 = vmatpush2.msra.mxu0 0.0
    %473 = vmatprep.subr.mxu0 0.0
    %474 = vmatpush2.msra.mxu0 0.0
    %475 = vmatprep.subr.mxu0 0.0
    %476 = vmatpush2.msra.mxu0 0.0
    %477 = vmatprep.subr.mxu0 0.0
    %478 = vmatpush2.msra.mxu0 0.0
    %479 = vmatprep.subr.mxu0 0.0
    %480 = vmatpush2.msra.mxu0 0.0
    %481 = vmatprep.subr.mxu0 0.0
    %482 = vmatpush2.msra.mxu0 0.0
    %483 = vmatprep.subr.mxu0 0.0
    %484 = vmatpush2.msra.mxu0 0.0
    %485 = vmatprep.subr.mxu0 0.0
    %486 = vmatpush2.msra.mxu0 0.0
    %487 = vmatprep.subr.mxu0 0.0
    %488 = vmatpush2.msra.mxu0 0.0
    %489 = vmatprep.subr.mxu0 0.0
    %490 = vmatpush2.msra.mxu0 0.0
    %491 = vmatprep.subr.mxu0 0.0
    %492 = vmatpush2.msra.mxu0 0.0
    %493 = vmatprep.subr.mxu0 0.0
    %494 = vmatpush2.msra.mxu0 0.0
    %495 = vmatprep.subr.mxu0 0.0
    %496 = vmatpush2.msra.mxu0 0.0
    %497 = vmatprep.mubr.f32.mxu0 0.0
    %498 = vmatmul.mubr.f32.gmra.mxu0 %v431
    %v499 = vpop.f32.mrf.mxu0
    %v500 = vadd.f32 %v50, %v499
    %v501 = vpop.f32.mrf.mxu0
    %502 = vdwg.mxu0
    %s503 = scalar_lea.vmem [#allocation2], 6
    %v504 = vld [vmem:[%s503] sm:$0x1]
    %v506 = vsel %vm54, %v504, 0
    %508 = vmatprep.subr.mxu0 0.0
    %509 = vmatpush1.msra.mxu0 0.0
    %510 = vmatprep.subr.mxu0 0.0
    %511 = vmatpush1.msra.mxu0 0.0
    %512 = vmatprep.subr.mxu0 0.0
    %513 = vmatpush1.msra.mxu0 0.0
    %514 = vmatprep.subr.mxu0 0.0
    %515 = vmatpush1.msra.mxu0 0.0
    %516 = vmatprep.subr.mxu0 0.0
    %517 = vmatpush1.msra.mxu0 0.0
    %518 = vmatprep.subr.mxu0 0.0
    %519 = vmatpush1.msra.mxu0 0.0
    %520 = vmatprep.subr.mxu0 0.0
    %521 = vmatpush1.msra.mxu0 0.0
    %522 = vmatprep.subr.mxu0 0.0
    %523 = vmatpush1.msra.mxu0 0.0
    %524 = vmatprep.subr.mxu0 0.0
    %525 = vmatpush1.msra.mxu0 0.0
    %526 = vmatprep.subr.mxu0 0.0
    %527 = vmatpush1.msra.mxu0 0.0
    %528 = vmatprep.subr.mxu0 0.0
    %529 = vmatpush1.msra.mxu0 0.0
    %530 = vmatprep.subr.mxu0 0.0
    %531 = vmatpush1.msra.mxu0 0.0
    %532 = vmatprep.subr.mxu0 0.0
    %533 = vmatpush1.msra.mxu0 0.0
    %534 = vmatprep.subr.mxu0 0.0
    %535 = vmatpush1.msra.mxu0 0.0
    %536 = vmatprep.subr.mxu0 0.0
    %537 = vmatpush1.msra.mxu0 %v40
    %538 = vmatprep.subr.mxu0 0.0
    %539 = vmatpush1.msra.mxu0 %v39
    %540 = vmatprep.subr.mxu0 0.0
    %541 = vmatpush2.msra.mxu0 0.0
    %542 = vmatprep.subr.mxu0 0.0
    %543 = vmatpush2.msra.mxu0 0.0
    %544 = vmatprep.subr.mxu0 0.0
    %545 = vmatpush2.msra.mxu0 0.0
    %546 = vmatprep.subr.mxu0 0.0
    %547 = vmatpush2.msra.mxu0 0.0
    %548 = vmatprep.subr.mxu0 0.0
    %549 = vmatpush2.msra.mxu0 0.0
    %550 = vmatprep.subr.mxu0 0.0
    %551 = vmatpush2.msra.mxu0 0.0
    %552 = vmatprep.subr.mxu0 0.0
    %553 = vmatpush2.msra.mxu0 0.0
    %554 = vmatprep.subr.mxu0 0.0
    %555 = vmatpush2.msra.mxu0 0.0
    %556 = vmatprep.subr.mxu0 0.0
    %557 = vmatpush2.msra.mxu0 0.0
    %558 = vmatprep.subr.mxu0 0.0
    %559 = vmatpush2.msra.mxu0 0.0
    %560 = vmatprep.subr.mxu0 0.0
    %561 = vmatpush2.msra.mxu0 0.0
    %562 = vmatprep.subr.mxu0 0.0
    %563 = vmatpush2.msra.mxu0 0.0
    %564 = vmatprep.subr.mxu0 0.0
    %565 = vmatpush2.msra.mxu0 0.0
    %566 = vmatprep.subr.mxu0 0.0
    %567 = vmatpush2.msra.mxu0 0.0
    %568 = vmatprep.subr.mxu0 0.0
    %569 = vmatpush2.msra.mxu0 0.0
    %570 = vmatprep.subr.mxu0 0.0
    %571 = vmatpush2.msra.mxu0 0.0
    %572 = vmatprep.mubr.f32.mxu0 0.0
    %573 = vmatmul.mubr.f32.gmra.mxu0 %v506
    %v574 = vpop.f32.mrf.mxu0
    %v575 = vadd.f32 %v50, %v574
    %v576 = vpop.f32.mrf.mxu0
    %577 = vdwg.mxu0
    %s578 = scalar_lea.vmem [#allocation2], 7
    %v579 = vld [vmem:[%s578] sm:$0x1]
    %v581 = vsel %vm54, %v579, 0
    %583 = vmatprep.subr.mxu0 0.0
    %584 = vmatpush1.msra.mxu0 0.0
    %585 = vmatprep.subr.mxu0 0.0
    %586 = vmatpush1.msra.mxu0 0.0
    %587 = vmatprep.subr.mxu0 0.0
    %588 = vmatpush1.msra.mxu0 0.0
    %589 = vmatprep.subr.mxu0 0.0
    %590 = vmatpush1.msra.mxu0 0.0
    %591 = vmatprep.subr.mxu0 0.0
    %592 = vmatpush1.msra.mxu0 0.0
    %593 = vmatprep.subr.mxu0 0.0
    %594 = vmatpush1.msra.mxu0 0.0
    %595 = vmatprep.subr.mxu0 0.0
    %596 = vmatpush1.msra.mxu0 0.0
    %597 = vmatprep.subr.mxu0 0.0
    %598 = vmatpush1.msra.mxu0 0.0
    %599 = vmatprep.subr.mxu0 0.0
    %600 = vmatpush1.msra.mxu0 0.0
    %601 = vmatprep.subr.mxu0 0.0
    %602 = vmatpush1.msra.mxu0 0.0
    %603 = vmatprep.subr.mxu0 0.0
    %604 = vmatpush1.msra.mxu0 0.0
    %605 = vmatprep.subr.mxu0 0.0
    %606 = vmatpush1.msra.mxu0 0.0
    %607 = vmatprep.subr.mxu0 0.0
    %608 = vmatpush1.msra.mxu0 0.0
    %609 = vmatprep.subr.mxu0 0.0
    %610 = vmatpush1.msra.mxu0 0.0
    %611 = vmatprep.subr.mxu0 0.0
    %612 = vmatpush1.msra.mxu0 %v40
    %613 = vmatprep.subr.mxu0 0.0
    %614 = vmatpush1.msra.mxu0 %v39
    %615 = vmatprep.subr.mxu0 0.0
    %616 = vmatpush2.msra.mxu0 0.0
    %617 = vmatprep.subr.mxu0 0.0
    %618 = vmatpush2.msra.mxu0 0.0
    %619 = vmatprep.subr.mxu0 0.0
    %620 = vmatpush2.msra.mxu0 0.0
    %621 = vmatprep.subr.mxu0 0.0
    %622 = vmatpush2.msra.mxu0 0.0
    %623 = vmatprep.subr.mxu0 0.0
    %624 = vmatpush2.msra.mxu0 0.0
    %625 = vmatprep.subr.mxu0 0.0
    %626 = vmatpush2.msra.mxu0 0.0
    %627 = vmatprep.subr.mxu0 0.0
    %628 = vmatpush2.msra.mxu0 0.0
    %629 = vmatprep.subr.mxu0 0.0
    %630 = vmatpush2.msra.mxu0 0.0
    %631 = vmatprep.subr.mxu0 0.0
    %632 = vmatpush2.msra.mxu0 0.0
    %633 = vmatprep.subr.mxu0 0.0
    %634 = vmatpush2.msra.mxu0 0.0
    %635 = vmatprep.subr.mxu0 0.0
    %636 = vmatpush2.msra.mxu0 0.0
    %637 = vmatprep.subr.mxu0 0.0
    %638 = vmatpush2.msra.mxu0 0.0
    %639 = vmatprep.subr.mxu0 0.0
    %640 = vmatpush2.msra.mxu0 0.0
    %641 = vmatprep.subr.mxu0 0.0
    %642 = vmatpush2.msra.mxu0 0.0
    %643 = vmatprep.subr.mxu0 0.0
    %644 = vmatpush2.msra.mxu0 0.0
    %645 = vmatprep.subr.mxu0 0.0
    %646 = vmatpush2.msra.mxu0 0.0
    %647 = vmatprep.mubr.f32.mxu0 0.0
    %648 = vmatmul.mubr.f32.gmra.mxu0 %v581
    %v649 = vpop.f32.mrf.mxu0
    %v650 = vadd.f32 %v50, %v649
    %v651 = vpop.f32.mrf.mxu0
    %652 = vdwg.mxu0
    %vm653 = vcmask 261120
    %v655 = vsel %vm653, 0.0, 0
    %657 = vmatprep.subr.mxu0 0.0
    %658 = vmatpush1.msra.mxu0 0.0
    %659 = vmatprep.subr.mxu0 0.0
    %660 = vmatpush1.msra.mxu0 0.0
    %661 = vmatprep.subr.mxu0 0.0
    %662 = vmatpush1.msra.mxu0 0.0
    %663 = vmatprep.subr.mxu0 0.0
    %664 = vmatpush1.msra.mxu0 0.0
    %665 = vmatprep.subr.mxu0 0.0
    %666 = vmatpush1.msra.mxu0 0.0
    %667 = vmatprep.subr.mxu0 0.0
    %668 = vmatpush1.msra.mxu0 0.0
    %669 = vmatprep.subr.mxu0 0.0
    %670 = vmatpush1.msra.mxu0 0.0
    %671 = vmatprep.subr.mxu0 0.0
    %672 = vmatpush1.msra.mxu0 0.0
    %673 = vmatprep.subr.mxu0 0.0
    %674 = vmatpush1.msra.mxu0 0.0
    %675 = vmatprep.subr.mxu0 0.0
    %676 = vmatpush1.msra.mxu0 0.0
    %677 = vmatprep.subr.mxu0 0.0
    %678 = vmatpush1.msra.mxu0 0.0
    %679 = vmatprep.subr.mxu0 0.0
    %680 = vmatpush1.msra.mxu0 0.0
    %681 = vmatprep.subr.mxu0 0.0
    %682 = vmatpush1.msra.mxu0 %v44
    %683 = vmatprep.subr.mxu0 0.0
    %684 = vmatpush1.msra.mxu0 %v43
    %685 = vmatprep.subr.mxu0 0.0
    %686 = vmatpush1.msra.mxu0 %v42
    %687 = vmatprep.subr.mxu0 0.0
    %688 = vmatpush1.msra.mxu0 %v41
    %689 = vmatprep.subr.mxu0 0.0
    %690 = vmatpush2.msra.mxu0 0.0
    %691 = vmatprep.subr.mxu0 0.0
    %692 = vmatpush2.msra.mxu0 0.0
    %693 = vmatprep.subr.mxu0 0.0
    %694 = vmatpush2.msra.mxu0 0.0
    %695 = vmatprep.subr.mxu0 0.0
    %696 = vmatpush2.msra.mxu0 0.0
    %697 = vmatprep.subr.mxu0 0.0
    %698 = vmatpush2.msra.mxu0 0.0
    %699 = vmatprep.subr.mxu0 0.0
    %700 = vmatpush2.msra.mxu0 0.0
    %701 = vmatprep.subr.mxu0 0.0
    %702 = vmatpush2.msra.mxu0 0.0
    %703 = vmatprep.subr.mxu0 0.0
    %704 = vmatpush2.msra.mxu0 0.0
    %705 = vmatprep.subr.mxu0 0.0
    %706 = vmatpush2.msra.mxu0 0.0
    %707 = vmatprep.subr.mxu0 0.0
    %708 = vmatpush2.msra.mxu0 0.0
    %709 = vmatprep.subr.mxu0 0.0
    %710 = vmatpush2.msra.mxu0 0.0
    %711 = vmatprep.subr.mxu0 0.0
    %712 = vmatpush2.msra.mxu0 0.0
    %713 = vmatprep.subr.mxu0 0.0
    %714 = vmatpush2.msra.mxu0 0.0
    %715 = vmatprep.subr.mxu0 0.0
    %716 = vmatpush2.msra.mxu0 0.0
    %717 = vmatprep.subr.mxu0 0.0
    %718 = vmatpush2.msra.mxu0 0.0
    %719 = vmatprep.subr.mxu0 0.0
    %720 = vmatpush2.msra.mxu0 0.0
    %721 = vmatprep.mubr.f32.mxu0 0.0
    %722 = vmatmul.mubr.f32.gmra.mxu0 %v655
    %v723 = vpop.f32.mrf.mxu0
    %v724 = vadd.f32 0.0, %v723
    %v725 = vpop.f32.mrf.mxu0
    %726 = vdwg.mxu0
    %v727 = vadd.f32 %v125, %v724
    %v728 = vtanh.pop %v727
    %v729 = vmul.f32 %v728, %v51
    %v730 = vadd.f32 %v729, %v52
    %v731 = vmul.f32 %v730, 0.0
    %733 = vrot.lane.b32.xlu0 %v730, 64
    %v734 = vpop.permute.xlu0 %733
    %v736 = vmul.f32 %v730, %v734
    %738 = vrot.lane.b32.xlu0 %v736, 32
    %v739 = vpop.permute.xlu0 %738
    %v741 = vadd.f32 %v731, %v739
    %v742 = vtanh.pop %v741
    %744 = vrot.lane.b32.xlu0 %v742, 64
    %v745 = vpop.permute.xlu0 %744
    %v747 = vmul.f32 %v730, %v745
    %749 = vrot.lane.b32.xlu0 %v747, 32
    %v750 = vpop.permute.xlu0 %749
    %v751 = vsel %vm653, %v750, 0
    %753 = vmatprep.subr.mxu0 0.0
    %754 = vmatpush1.msra.mxu0 0.0
    %755 = vmatprep.subr.mxu0 0.0
    %756 = vmatpush1.msra.mxu0 0.0
    %757 = vmatprep.subr.mxu0 0.0
    %758 = vmatpush1.msra.mxu0 0.0
    %759 = vmatprep.subr.mxu0 0.0
    %760 = vmatpush1.msra.mxu0 0.0
    %761 = vmatprep.subr.mxu0 0.0
    %762 = vmatpush1.msra.mxu0 0.0
    %763 = vmatprep.subr.mxu0 0.0
    %764 = vmatpush1.msra.mxu0 0.0
    %765 = vmatprep.subr.mxu0 0.0
    %766 = vmatpush1.msra.mxu0 0.0
    %767 = vmatprep.subr.mxu0 0.0
    %768 = vmatpush1.msra.mxu0 0.0
    %769 = vmatprep.subr.mxu0 0.0
    %770 = vmatpush1.msra.mxu0 0.0
    %771 = vmatprep.subr.mxu0 0.0
    %772 = vmatpush1.msra.mxu0 0.0
    %773 = vmatprep.subr.mxu0 0.0
    %774 = vmatpush1.msra.mxu0 0.0
    %775 = vmatprep.subr.mxu0 0.0
    %776 = vmatpush1.msra.mxu0 0.0
    %777 = vmatprep.subr.mxu0 0.0
    %778 = vmatpush1.msra.mxu0 %v44
    %779 = vmatprep.subr.mxu0 0.0
    %780 = vmatpush1.msra.mxu0 %v43
    %781 = vmatprep.subr.mxu0 0.0
    %782 = vmatpush1.msra.mxu0 %v42
    %783 = vmatprep.subr.mxu0 0.0
    %784 = vmatpush1.msra.mxu0 %v41
    %785 = vmatprep.subr.mxu0 0.0
    %786 = vmatpush2.msra.mxu0 0.0
    %787 = vmatprep.subr.mxu0 0.0
    %788 = vmatpush2.msra.mxu0 0.0
    %789 = vmatprep.subr.mxu0 0.0
    %790 = vmatpush2.msra.mxu0 0.0
    %791 = vmatprep.subr.mxu0 0.0
    %792 = vmatpush2.msra.mxu0 0.0
    %793 = vmatprep.subr.mxu0 0.0
    %794 = vmatpush2.msra.mxu0 0.0
    %795 = vmatprep.subr.mxu0 0.0
    %796 = vmatpush2.msra.mxu0 0.0
    %797 = vmatprep.subr.mxu0 0.0
    %798 = vmatpush2.msra.mxu0 0.0
    %799 = vmatprep.subr.mxu0 0.0
    %800 = vmatpush2.msra.mxu0 0.0
    %801 = vmatprep.subr.mxu0 0.0
    %802 = vmatpush2.msra.mxu0 0.0
    %803 = vmatprep.subr.mxu0 0.0
    %804 = vmatpush2.msra.mxu0 0.0
    %805 = vmatprep.subr.mxu0 0.0
    %806 = vmatpush2.msra.mxu0 0.0
    %807 = vmatprep.subr.mxu0 0.0
    %808 = vmatpush2.msra.mxu0 0.0
    %809 = vmatprep.subr.mxu0 0.0
    %810 = vmatpush2.msra.mxu0 0.0
    %811 = vmatprep.subr.mxu0 0.0
    %812 = vmatpush2.msra.mxu0 0.0
    %813 = vmatprep.subr.mxu0 0.0
    %814 = vmatpush2.msra.mxu0 0.0
    %815 = vmatprep.subr.mxu0 0.0
    %816 = vmatpush2.msra.mxu0 0.0
    %817 = vmatprep.mubr.f32.mxu0 0.0
    %818 = vmatmul.mubr.f32.gmra.mxu0 %v751
    %v819 = vpop.f32.mrf.mxu0
    %v820 = vadd.f32 0.0, %v819
    %v821 = vpop.f32.mrf.mxu0
    %822 = vdwg.mxu0
    %v823 = vadd.f32 %v200, %v820
    %v824 = vtanh.pop %v823
    %v825 = vmul.f32 %v824, %v51
    %v826 = vadd.f32 %v825, %v52
    %v827 = vmul.f32 %v826, %v741
    %829 = vrot.lane.b32.xlu0 %v826, 64
    %v830 = vpop.permute.xlu0 %829
    %v832 = vmul.f32 %v826, %v830
    %834 = vrot.lane.b32.xlu0 %v832, 32
    %v835 = vpop.permute.xlu0 %834
    %v837 = vadd.f32 %v827, %v835
    %v838 = vtanh.pop %v837
    %840 = vrot.lane.b32.xlu0 %v838, 64
    %v841 = vpop.permute.xlu0 %840
    %v843 = vmul.f32 %v826, %v841
    %845 = vrot.lane.b32.xlu0 %v843, 32
    %v846 = vpop.permute.xlu0 %845
    %v847 = vsel %vm653, %v846, 0
    %849 = vmatprep.subr.mxu0 0.0
    %850 = vmatpush1.msra.mxu0 0.0
    %851 = vmatprep.subr.mxu0 0.0
    %852 = vmatpush1.msra.mxu0 0.0
    %853 = vmatprep.subr.mxu0 0.0
    %854 = vmatpush1.msra.mxu0 0.0
    %855 = vmatprep.subr.mxu0 0.0
    %856 = vmatpush1.msra.mxu0 0.0
    %857 = vmatprep.subr.mxu0 0.0
    %858 = vmatpush1.msra.mxu0 0.0
    %859 = vmatprep.subr.mxu0 0.0
    %860 = vmatpush1.msra.mxu0 0.0
    %861 = vmatprep.subr.mxu0 0.0
    %862 = vmatpush1.msra.mxu0 0.0
    %863 = vmatprep.subr.mxu0 0.0
    %864 = vmatpush1.msra.mxu0 0.0
    %865 = vmatprep.subr.mxu0 0.0
    %866 = vmatpush1.msra.mxu0 0.0
    %867 = vmatprep.subr.mxu0 0.0
    %868 = vmatpush1.msra.mxu0 0.0
    %869 = vmatprep.subr.mxu0 0.0
    %870 = vmatpush1.msra.mxu0 0.0
    %871 = vmatprep.subr.mxu0 0.0
    %872 = vmatpush1.msra.mxu0 0.0
    %873 = vmatprep.subr.mxu0 0.0
    %874 = vmatpush1.msra.mxu0 %v44
    %875 = vmatprep.subr.mxu0 0.0
    %876 = vmatpush1.msra.mxu0 %v43
    %877 = vmatprep.subr.mxu0 0.0
    %878 = vmatpush1.msra.mxu0 %v42
    %879 = vmatprep.subr.mxu0 0.0
    %880 = vmatpush1.msra.mxu0 %v41
    %881 = vmatprep.subr.mxu0 0.0
    %882 = vmatpush2.msra.mxu0 0.0
    %883 = vmatprep.subr.mxu0 0.0
    %884 = vmatpush2.msra.mxu0 0.0
    %885 = vmatprep.subr.mxu0 0.0
    %886 = vmatpush2.msra.mxu0 0.0
    %887 = vmatprep.subr.mxu0 0.0
    %888 = vmatpush2.msra.mxu0 0.0
    %889 = vmatprep.subr.mxu0 0.0
    %890 = vmatpush2.msra.mxu0 0.0
    %891 = vmatprep.subr.mxu0 0.0
    %892 = vmatpush2.msra.mxu0 0.0
    %893 = vmatprep.subr.mxu0 0.0
    %894 = vmatpush2.msra.mxu0 0.0
    %895 = vmatprep.subr.mxu0 0.0
    %896 = vmatpush2.msra.mxu0 0.0
    %897 = vmatprep.subr.mxu0 0.0
    %898 = vmatpush2.msra.mxu0 0.0
    %899 = vmatprep.subr.mxu0 0.0
    %900 = vmatpush2.msra.mxu0 0.0
    %901 = vmatprep.subr.mxu0 0.0
    %902 = vmatpush2.msra.mxu0 0.0
    %903 = vmatprep.subr.mxu0 0.0
    %904 = vmatpush2.msra.mxu0 0.0
    %905 = vmatprep.subr.mxu0 0.0
    %906 = vmatpush2.msra.mxu0 0.0
    %907 = vmatprep.subr.mxu0 0.0
    %908 = vmatpush2.msra.mxu0 0.0
    %909 = vmatprep.subr.mxu0 0.0
    %910 = vmatpush2.msra.mxu0 0.0
    %911 = vmatprep.subr.mxu0 0.0
    %912 = vmatpush2.msra.mxu0 0.0
    %913 = vmatprep.mubr.f32.mxu0 0.0
    %914 = vmatmul.mubr.f32.gmra.mxu0 %v847
    %v915 = vpop.f32.mrf.mxu0
    %v916 = vadd.f32 0.0, %v915
    %v917 = vpop.f32.mrf.mxu0
    %918 = vdwg.mxu0
    %v919 = vadd.f32 %v275, %v916
    %v920 = vtanh.pop %v919
    %v921 = vmul.f32 %v920, %v51
    %v922 = vadd.f32 %v921, %v52
    %v923 = vmul.f32 %v922, %v837
    %925 = vrot.lane.b32.xlu0 %v922, 64
    %v926 = vpop.permute.xlu0 %925
    %v928 = vmul.f32 %v922, %v926
    %930 = vrot.lane.b32.xlu0 %v928, 32
    %v931 = vpop.permute.xlu0 %930
    %v933 = vadd.f32 %v923, %v931
    %v934 = vtanh.pop %v933
    %936 = vrot.lane.b32.xlu0 %v934, 64
    %v937 = vpop.permute.xlu0 %936
    %v939 = vmul.f32 %v922, %v937
    %941 = vrot.lane.b32.xlu0 %v939, 32
    %v942 = vpop.permute.xlu0 %941
    %v943 = vsel %vm653, %v942, 0
    %945 = vmatprep.subr.mxu0 0.0
    %946 = vmatpush1.msra.mxu0 0.0
    %947 = vmatprep.subr.mxu0 0.0
    %948 = vmatpush1.msra.mxu0 0.0
    %949 = vmatprep.subr.mxu0 0.0
    %950 = vmatpush1.msra.mxu0 0.0
    %951 = vmatprep.subr.mxu0 0.0
    %952 = vmatpush1.msra.mxu0 0.0
    %953 = vmatprep.subr.mxu0 0.0
    %954 = vmatpush1.msra.mxu0 0.0
    %955 = vmatprep.subr.mxu0 0.0
    %956 = vmatpush1.msra.mxu0 0.0
    %957 = vmatprep.subr.mxu0 0.0
    %958 = vmatpush1.msra.mxu0 0.0
    %959 = vmatprep.subr.mxu0 0.0
    %960 = vmatpush1.msra.mxu0 0.0
    %961 = vmatprep.subr.mxu0 0.0
    %962 = vmatpush1.msra.mxu0 0.0
    %963 = vmatprep.subr.mxu0 0.0
    %964 = vmatpush1.msra.mxu0 0.0
    %965 = vmatprep.subr.mxu0 0.0
    %966 = vmatpush1.msra.mxu0 0.0
    %967 = vmatprep.subr.mxu0 0.0
    %968 = vmatpush1.msra.mxu0 0.0
    %969 = vmatprep.subr.mxu0 0.0
    %970 = vmatpush1.msra.mxu0 %v44
    %971 = vmatprep.subr.mxu0 0.0
    %972 = vmatpush1.msra.mxu0 %v43
    %973 = vmatprep.subr.mxu0 0.0
    %974 = vmatpush1.msra.mxu0 %v42
    %975 = vmatprep.subr.mxu0 0.0
    %976 = vmatpush1.msra.mxu0 %v41
    %977 = vmatprep.subr.mxu0 0.0
    %978 = vmatpush2.msra.mxu0 0.0
    %979 = vmatprep.subr.mxu0 0.0
    %980 = vmatpush2.msra.mxu0 0.0
    %981 = vmatprep.subr.mxu0 0.0
    %982 = vmatpush2.msra.mxu0 0.0
    %983 = vmatprep.subr.mxu0 0.0
    %984 = vmatpush2.msra.mxu0 0.0
    %985 = vmatprep.subr.mxu0 0.0
    %986 = vmatpush2.msra.mxu0 0.0
    %987 = vmatprep.subr.mxu0 0.0
    %988 = vmatpush2.msra.mxu0 0.0
    %989 = vmatprep.subr.mxu0 0.0
    %990 = vmatpush2.msra.mxu0 0.0
    %991 = vmatprep.subr.mxu0 0.0
    %992 = vmatpush2.msra.mxu0 0.0
    %993 = vmatprep.subr.mxu0 0.0
    %994 = vmatpush2.msra.mxu0 0.0
    %995 = vmatprep.subr.mxu0 0.0
    %996 = vmatpush2.msra.mxu0 0.0
    %997 = vmatprep.subr.mxu0 0.0
    %998 = vmatpush2.msra.mxu0 0.0
    %999 = vmatprep.subr.mxu0 0.0
    %1000 = vmatpush2.msra.mxu0 0.0
    %1001 = vmatprep.subr.mxu0 0.0
    %1002 = vmatpush2.msra.mxu0 0.0
    %1003 = vmatprep.subr.mxu0 0.0
    %1004 = vmatpush2.msra.mxu0 0.0
    %1005 = vmatprep.subr.mxu0 0.0
    %1006 = vmatpush2.msra.mxu0 0.0
    %1007 = vmatprep.subr.mxu0 0.0
    %1008 = vmatpush2.msra.mxu0 0.0
    %1009 = vmatprep.mubr.f32.mxu0 0.0
    %1010 = vmatmul.mubr.f32.gmra.mxu0 %v943
    %v1011 = vpop.f32.mrf.mxu0
    %v1012 = vadd.f32 0.0, %v1011
    %v1013 = vpop.f32.mrf.mxu0
    %1014 = vdwg.mxu0
    %v1015 = vadd.f32 %v350, %v1012
    %v1016 = vtanh.pop %v1015
    %v1017 = vmul.f32 %v1016, %v51
    %v1018 = vadd.f32 %v1017, %v52
    %v1019 = vmul.f32 %v1018, %v933
    %1021 = vrot.lane.b32.xlu0 %v1018, 64
    %v1022 = vpop.permute.xlu0 %1021
    %v1024 = vmul.f32 %v1018, %v1022
    %1026 = vrot.lane.b32.xlu0 %v1024, 32
    %v1027 = vpop.permute.xlu0 %1026
    %v1029 = vadd.f32 %v1019, %v1027
    %v1030 = vtanh.pop %v1029
    %1032 = vrot.lane.b32.xlu0 %v1030, 64
    %v1033 = vpop.permute.xlu0 %1032
    %v1035 = vmul.f32 %v1018, %v1033
    %1037 = vrot.lane.b32.xlu0 %v1035, 32
    %v1038 = vpop.permute.xlu0 %1037
    %v1039 = vsel %vm653, %v1038, 0
    %1041 = vmatprep.subr.mxu0 0.0
    %1042 = vmatpush1.msra.mxu0 0.0
    %1043 = vmatprep.subr.mxu0 0.0
    %1044 = vmatpush1.msra.mxu0 0.0
    %1045 = vmatprep.subr.mxu0 0.0
    %1046 = vmatpush1.msra.mxu0 0.0
    %1047 = vmatprep.subr.mxu0 0.0
    %1048 = vmatpush1.msra.mxu0 0.0
    %1049 = vmatprep.subr.mxu0 0.0
    %1050 = vmatpush1.msra.mxu0 0.0
    %1051 = vmatprep.subr.mxu0 0.0
    %1052 = vmatpush1.msra.mxu0 0.0
    %1053 = vmatprep.subr.mxu0 0.0
    %1054 = vmatpush1.msra.mxu0 0.0
    %1055 = vmatprep.subr.mxu0 0.0
    %1056 = vmatpush1.msra.mxu0 0.0
    %1057 = vmatprep.subr.mxu0 0.0
    %1058 = vmatpush1.msra.mxu0 0.0
    %1059 = vmatprep.subr.mxu0 0.0
    %1060 = vmatpush1.msra.mxu0 0.0
    %1061 = vmatprep.subr.mxu0 0.0
    %1062 = vmatpush1.msra.mxu0 0.0
    %1063 = vmatprep.subr.mxu0 0.0
    %1064 = vmatpush1.msra.mxu0 0.0
    %1065 = vmatprep.subr.mxu0 0.0
    %1066 = vmatpush1.msra.mxu0 %v44
    %1067 = vmatprep.subr.mxu0 0.0
    %1068 = vmatpush1.msra.mxu0 %v43
    %1069 = vmatprep.subr.mxu0 0.0
    %1070 = vmatpush1.msra.mxu0 %v42
    %1071 = vmatprep.subr.mxu0 0.0
    %1072 = vmatpush1.msra.mxu0 %v41
    %1073 = vmatprep.subr.mxu0 0.0
    %1074 = vmatpush2.msra.mxu0 0.0
    %1075 = vmatprep.subr.mxu0 0.0
    %1076 = vmatpush2.msra.mxu0 0.0
    %1077 = vmatprep.subr.mxu0 0.0
    %1078 = vmatpush2.msra.mxu0 0.0
    %1079 = vmatprep.subr.mxu0 0.0
    %1080 = vmatpush2.msra.mxu0 0.0
    %1081 = vmatprep.subr.mxu0 0.0
    %1082 = vmatpush2.msra.mxu0 0.0
    %1083 = vmatprep.subr.mxu0 0.0
    %1084 = vmatpush2.msra.mxu0 0.0
    %1085 = vmatprep.subr.mxu0 0.0
    %1086 = vmatpush2.msra.mxu0 0.0
    %1087 = vmatprep.subr.mxu0 0.0
    %1088 = vmatpush2.msra.mxu0 0.0
    %1089 = vmatprep.subr.mxu0 0.0
    %1090 = vmatpush2.msra.mxu0 0.0
    %1091 = vmatprep.subr.mxu0 0.0
    %1092 = vmatpush2.msra.mxu0 0.0
    %1093 = vmatprep.subr.mxu0 0.0
    %1094 = vmatpush2.msra.mxu0 0.0
    %1095 = vmatprep.subr.mxu0 0.0
    %1096 = vmatpush2.msra.mxu0 0.0
    %1097 = vmatprep.subr.mxu0 0.0
    %1098 = vmatpush2.msra.mxu0 0.0
    %1099 = vmatprep.subr.mxu0 0.0
    %1100 = vmatpush2.msra.mxu0 0.0
    %1101 = vmatprep.subr.mxu0 0.0
    %1102 = vmatpush2.msra.mxu0 0.0
    %1103 = vmatprep.subr.mxu0 0.0
    %1104 = vmatpush2.msra.mxu0 0.0
    %1105 = vmatprep.mubr.f32.mxu0 0.0
    %1106 = vmatmul.mubr.f32.gmra.mxu0 %v1039
    %v1107 = vpop.f32.mrf.mxu0
    %v1108 = vadd.f32 0.0, %v1107
    %v1109 = vpop.f32.mrf.mxu0
    %1110 = vdwg.mxu0
    %v1111 = vadd.f32 %v425, %v1108
    %v1112 = vtanh.pop %v1111
    %v1113 = vmul.f32 %v1112, %v51
    %v1114 = vadd.f32 %v1113, %v52
    %v1115 = vmul.f32 %v1114, %v1029
    %1117 = vrot.lane.b32.xlu0 %v1114, 64
    %v1118 = vpop.permute.xlu0 %1117
    %v1120 = vmul.f32 %v1114, %v1118
    %1122 = vrot.lane.b32.xlu0 %v1120, 32
    %v1123 = vpop.permute.xlu0 %1122
    %v1125 = vadd.f32 %v1115, %v1123
    %v1126 = vtanh.pop %v1125
    %1128 = vrot.lane.b32.xlu0 %v1126, 64
    %v1129 = vpop.permute.xlu0 %1128
    %v1131 = vmul.f32 %v1114, %v1129
    %1133 = vrot.lane.b32.xlu0 %v1131, 32
    %v1134 = vpop.permute.xlu0 %1133
    %v1135 = vsel %vm653, %v1134, 0
    %1137 = vmatprep.subr.mxu0 0.0
    %1138 = vmatpush1.msra.mxu0 0.0
    %1139 = vmatprep.subr.mxu0 0.0
    %1140 = vmatpush1.msra.mxu0 0.0
    %1141 = vmatprep.subr.mxu0 0.0
    %1142 = vmatpush1.msra.mxu0 0.0
    %1143 = vmatprep.subr.mxu0 0.0
    %1144 = vmatpush1.msra.mxu0 0.0
    %1145 = vmatprep.subr.mxu0 0.0
    %1146 = vmatpush1.msra.mxu0 0.0
    %1147 = vmatprep.subr.mxu0 0.0
    %1148 = vmatpush1.msra.mxu0 0.0
    %1149 = vmatprep.subr.mxu0 0.0
    %1150 = vmatpush1.msra.mxu0 0.0
    %1151 = vmatprep.subr.mxu0 0.0
    %1152 = vmatpush1.msra.mxu0 0.0
    %1153 = vmatprep.subr.mxu0 0.0
    %1154 = vmatpush1.msra.mxu0 0.0
    %1155 = vmatprep.subr.mxu0 0.0
    %1156 = vmatpush1.msra.mxu0 0.0
    %1157 = vmatprep.subr.mxu0 0.0
    %1158 = vmatpush1.msra.mxu0 0.0
    %1159 = vmatprep.subr.mxu0 0.0
    %1160 = vmatpush1.msra.mxu0 0.0
    %1161 = vmatprep.subr.mxu0 0.0
    %1162 = vmatpush1.msra.mxu0 %v44
    %1163 = vmatprep.subr.mxu0 0.0
    %1164 = vmatpush1.msra.mxu0 %v43
    %1165 = vmatprep.subr.mxu0 0.0
    %1166 = vmatpush1.msra.mxu0 %v42
    %1167 = vmatprep.subr.mxu0 0.0
    %1168 = vmatpush1.msra.mxu0 %v41
    %1169 = vmatprep.subr.mxu0 0.0
    %1170 = vmatpush2.msra.mxu0 0.0
    %1171 = vmatprep.subr.mxu0 0.0
    %1172 = vmatpush2.msra.mxu0 0.0
    %1173 = vmatprep.subr.mxu0 0.0
    %1174 = vmatpush2.msra.mxu0 0.0
    %1175 = vmatprep.subr.mxu0 0.0
    %1176 = vmatpush2.msra.mxu0 0.0
    %1177 = vmatprep.subr.mxu0 0.0
    %1178 = vmatpush2.msra.mxu0 0.0
    %1179 = vmatprep.subr.mxu0 0.0
    %1180 = vmatpush2.msra.mxu0 0.0
    %1181 = vmatprep.subr.mxu0 0.0
    %1182 = vmatpush2.msra.mxu0 0.0
    %1183 = vmatprep.subr.mxu0 0.0
    %1184 = vmatpush2.msra.mxu0 0.0
    %1185 = vmatprep.subr.mxu0 0.0
    %1186 = vmatpush2.msra.mxu0 0.0
    %1187 = vmatprep.subr.mxu0 0.0
    %1188 = vmatpush2.msra.mxu0 0.0
    %1189 = vmatprep.subr.mxu0 0.0
    %1190 = vmatpush2.msra.mxu0 0.0
    %1191 = vmatprep.subr.mxu0 0.0
    %1192 = vmatpush2.msra.mxu0 0.0
    %1193 = vmatprep.subr.mxu0 0.0
    %1194 = vmatpush2.msra.mxu0 0.0
    %1195 = vmatprep.subr.mxu0 0.0
    %1196 = vmatpush2.msra.mxu0 0.0
    %1197 = vmatprep.subr.mxu0 0.0
    %1198 = vmatpush2.msra.mxu0 0.0
    %1199 = vmatprep.subr.mxu0 0.0
    %1200 = vmatpush2.msra.mxu0 0.0
    %1201 = vmatprep.mubr.f32.mxu0 0.0
    %1202 = vmatmul.mubr.f32.gmra.mxu0 %v1135
    %v1203 = vpop.f32.mrf.mxu0
    %v1204 = vadd.f32 0.0, %v1203
    %v1205 = vpop.f32.mrf.mxu0
    %1206 = vdwg.mxu0
    %v1207 = vadd.f32 %v500, %v1204
    %v1208 = vtanh.pop %v1207
    %v1209 = vmul.f32 %v1208, %v51
    %v1210 = vadd.f32 %v1209, %v52
    %v1211 = vmul.f32 %v1210, %v1125
    %1213 = vrot.lane.b32.xlu0 %v1210, 64
    %v1214 = vpop.permute.xlu0 %1213
    %v1216 = vmul.f32 %v1210, %v1214
    %1218 = vrot.lane.b32.xlu0 %v1216, 32
    %v1219 = vpop.permute.xlu0 %1218
    %v1221 = vadd.f32 %v1211, %v1219
    %v1222 = vtanh.pop %v1221
    %1224 = vrot.lane.b32.xlu0 %v1222, 64
    %v1225 = vpop.permute.xlu0 %1224
    %v1227 = vmul.f32 %v1210, %v1225
    %1229 = vrot.lane.b32.xlu0 %v1227, 32
    %v1230 = vpop.permute.xlu0 %1229
    %v1231 = vsel %vm653, %v1230, 0
    %1233 = vmatprep.subr.mxu0 0.0
    %1234 = vmatpush1.msra.mxu0 0.0
    %1235 = vmatprep.subr.mxu0 0.0
    %1236 = vmatpush1.msra.mxu0 0.0
    %1237 = vmatprep.subr.mxu0 0.0
    %1238 = vmatpush1.msra.mxu0 0.0
    %1239 = vmatprep.subr.mxu0 0.0
    %1240 = vmatpush1.msra.mxu0 0.0
    %1241 = vmatprep.subr.mxu0 0.0
    %1242 = vmatpush1.msra.mxu0 0.0
    %1243 = vmatprep.subr.mxu0 0.0
    %1244 = vmatpush1.msra.mxu0 0.0
    %1245 = vmatprep.subr.mxu0 0.0
    %1246 = vmatpush1.msra.mxu0 0.0
    %1247 = vmatprep.subr.mxu0 0.0
    %1248 = vmatpush1.msra.mxu0 0.0
    %1249 = vmatprep.subr.mxu0 0.0
    %1250 = vmatpush1.msra.mxu0 0.0
    %1251 = vmatprep.subr.mxu0 0.0
    %1252 = vmatpush1.msra.mxu0 0.0
    %1253 = vmatprep.subr.mxu0 0.0
    %1254 = vmatpush1.msra.mxu0 0.0
    %1255 = vmatprep.subr.mxu0 0.0
    %1256 = vmatpush1.msra.mxu0 0.0
    %1257 = vmatprep.subr.mxu0 0.0
    %1258 = vmatpush1.msra.mxu0 %v44
    %1259 = vmatprep.subr.mxu0 0.0
    %1260 = vmatpush1.msra.mxu0 %v43
    %1261 = vmatprep.subr.mxu0 0.0
    %1262 = vmatpush1.msra.mxu0 %v42
    %1263 = vmatprep.subr.mxu0 0.0
    %1264 = vmatpush1.msra.mxu0 %v41
    %1265 = vmatprep.subr.mxu0 0.0
    %1266 = vmatpush2.msra.mxu0 0.0
    %1267 = vmatprep.subr.mxu0 0.0
    %1268 = vmatpush2.msra.mxu0 0.0
    %1269 = vmatprep.subr.mxu0 0.0
    %1270 = vmatpush2.msra.mxu0 0.0
    %1271 = vmatprep.subr.mxu0 0.0
    %1272 = vmatpush2.msra.mxu0 0.0
    %1273 = vmatprep.subr.mxu0 0.0
    %1274 = vmatpush2.msra.mxu0 0.0
    %1275 = vmatprep.subr.mxu0 0.0
    %1276 = vmatpush2.msra.mxu0 0.0
    %1277 = vmatprep.subr.mxu0 0.0
    %1278 = vmatpush2.msra.mxu0 0.0
    %1279 = vmatprep.subr.mxu0 0.0
    %1280 = vmatpush2.msra.mxu0 0.0
    %1281 = vmatprep.subr.mxu0 0.0
    %1282 = vmatpush2.msra.mxu0 0.0
    %1283 = vmatprep.subr.mxu0 0.0
    %1284 = vmatpush2.msra.mxu0 0.0
    %1285 = vmatprep.subr.mxu0 0.0
    %1286 = vmatpush2.msra.mxu0 0.0
    %1287 = vmatprep.subr.mxu0 0.0
    %1288 = vmatpush2.msra.mxu0 0.0
    %1289 = vmatprep.subr.mxu0 0.0
    %1290 = vmatpush2.msra.mxu0 0.0
    %1291 = vmatprep.subr.mxu0 0.0
    %1292 = vmatpush2.msra.mxu0 0.0
    %1293 = vmatprep.subr.mxu0 0.0
    %1294 = vmatpush2.msra.mxu0 0.0
    %1295 = vmatprep.subr.mxu0 0.0
    %1296 = vmatpush2.msra.mxu0 0.0
    %1297 = vmatprep.mubr.f32.mxu0 0.0
    %1298 = vmatmul.mubr.f32.gmra.mxu0 %v1231
    %v1299 = vpop.f32.mrf.mxu0
    %v1300 = vadd.f32 0.0, %v1299
    %v1301 = vpop.f32.mrf.mxu0
    %1302 = vdwg.mxu0
    %v1303 = vadd.f32 %v575, %v1300
    %v1304 = vtanh.pop %v1303
    %v1305 = vmul.f32 %v1304, %v51
    %v1306 = vadd.f32 %v1305, %v52
    %v1307 = vmul.f32 %v1306, %v1221
    %1309 = vrot.lane.b32.xlu0 %v1306, 64
    %v1310 = vpop.permute.xlu0 %1309
    %v1312 = vmul.f32 %v1306, %v1310
    %1314 = vrot.lane.b32.xlu0 %v1312, 32
    %v1315 = vpop.permute.xlu0 %1314
    %v1317 = vadd.f32 %v1307, %v1315
    %v1318 = vtanh.pop %v1317
    %1320 = vrot.lane.b32.xlu0 %v1318, 64
    %v1321 = vpop.permute.xlu0 %1320
    %v1323 = vmul.f32 %v1306, %v1321
    %1325 = vrot.lane.b32.xlu0 %v1323, 32
    %v1326 = vpop.permute.xlu0 %1325
    %v1327 = vsel %vm653, %v1326, 0
    %1329 = vmatprep.subr.mxu0 0.0
    %1330 = vmatpush1.msra.mxu0 0.0
    %1331 = vmatprep.subr.mxu0 0.0
    %1332 = vmatpush1.msra.mxu0 0.0
    %1333 = vmatprep.subr.mxu0 0.0
    %1334 = vmatpush1.msra.mxu0 0.0
    %1335 = vmatprep.subr.mxu0 0.0
    %1336 = vmatpush1.msra.mxu0 0.0
    %1337 = vmatprep.subr.mxu0 0.0
    %1338 = vmatpush1.msra.mxu0 0.0
    %1339 = vmatprep.subr.mxu0 0.0
    %1340 = vmatpush1.msra.mxu0 0.0
    %1341 = vmatprep.subr.mxu0 0.0
    %1342 = vmatpush1.msra.mxu0 0.0
    %1343 = vmatprep.subr.mxu0 0.0
    %1344 = vmatpush1.msra.mxu0 0.0
    %1345 = vmatprep.subr.mxu0 0.0
    %1346 = vmatpush1.msra.mxu0 0.0
    %1347 = vmatprep.subr.mxu0 0.0
    %1348 = vmatpush1.msra.mxu0 0.0
    %1349 = vmatprep.subr.mxu0 0.0
    %1350 = vmatpush1.msra.mxu0 0.0
    %1351 = vmatprep.subr.mxu0 0.0
    %1352 = vmatpush1.msra.mxu0 0.0
    %1353 = vmatprep.subr.mxu0 0.0
    %1354 = vmatpush1.msra.mxu0 %v44
    %1355 = vmatprep.subr.mxu0 0.0
    %1356 = vmatpush1.msra.mxu0 %v43
    %1357 = vmatprep.subr.mxu0 0.0
    %1358 = vmatpush1.msra.mxu0 %v42
    %1359 = vmatprep.subr.mxu0 0.0
    %1360 = vmatpush1.msra.mxu0 %v41
    %1361 = vmatprep.subr.mxu0 0.0
    %1362 = vmatpush2.msra.mxu0 0.0
    %1363 = vmatprep.subr.mxu0 0.0
    %1364 = vmatpush2.msra.mxu0 0.0
    %1365 = vmatprep.subr.mxu0 0.0
    %1366 = vmatpush2.msra.mxu0 0.0
    %1367 = vmatprep.subr.mxu0 0.0
    %1368 = vmatpush2.msra.mxu0 0.0
    %1369 = vmatprep.subr.mxu0 0.0
    %1370 = vmatpush2.msra.mxu0 0.0
    %1371 = vmatprep.subr.mxu0 0.0
    %1372 = vmatpush2.msra.mxu0 0.0
    %1373 = vmatprep.subr.mxu0 0.0
    %1374 = vmatpush2.msra.mxu0 0.0
    %1375 = vmatprep.subr.mxu0 0.0
    %1376 = vmatpush2.msra.mxu0 0.0
    %1377 = vmatprep.subr.mxu0 0.0
    %1378 = vmatpush2.msra.mxu0 0.0
    %1379 = vmatprep.subr.mxu0 0.0
    %1380 = vmatpush2.msra.mxu0 0.0
    %1381 = vmatprep.subr.mxu0 0.0
    %1382 = vmatpush2.msra.mxu0 0.0
    %1383 = vmatprep.subr.mxu0 0.0
    %1384 = vmatpush2.msra.mxu0 0.0
    %1385 = vmatprep.subr.mxu0 0.0
    %1386 = vmatpush2.msra.mxu0 0.0
    %1387 = vmatprep.subr.mxu0 0.0
    %1388 = vmatpush2.msra.mxu0 0.0
    %1389 = vmatprep.subr.mxu0 0.0
    %1390 = vmatpush2.msra.mxu0 0.0
    %1391 = vmatprep.subr.mxu0 0.0
    %1392 = vmatpush2.msra.mxu0 0.0
    %1393 = vmatprep.mubr.f32.mxu0 0.0
    %1394 = vmatmul.mubr.f32.gmra.mxu0 %v1327
    %v1395 = vpop.f32.mrf.mxu0
    %v1396 = vadd.f32 0.0, %v1395
    %v1397 = vpop.f32.mrf.mxu0
    %1398 = vdwg.mxu0
    %v1399 = vadd.f32 %v650, %v1396
    %v1400 = vtanh.pop %v1399
    %v1401 = vmul.f32 %v1400, %v51
    %v1402 = vadd.f32 %v1401, %v52
    %v1403 = vmul.f32 %v1402, %v1317
    %1405 = vrot.lane.b32.xlu0 %v1402, 64
    %v1406 = vpop.permute.xlu0 %1405
    %v1408 = vmul.f32 %v1402, %v1406
    %1410 = vrot.lane.b32.xlu0 %v1408, 32
    %v1411 = vpop.permute.xlu0 %1410
    %v1413 = vadd.f32 %v1403, %v1411
    %v1414 = vtanh.pop %v1413
    %1416 = vrot.lane.b32.xlu0 %v1414, 64
    %v1417 = vpop.permute.xlu0 %1416
    %v1419 = vmul.f32 %v1402, %v1417
    %1421 = vrot.lane.b32.xlu0 %v1419, 32
    %v1422 = vpop.permute.xlu0 %1421
    %v1423 = vsel %vm653, %v1422, 0
    %1425 = vmatprep.subr.mxu0 0.0
    %1426 = vmatpush1.msra.mxu0 0.0
    %1427 = vmatprep.subr.mxu0 0.0
    %1428 = vmatpush1.msra.mxu0 0.0
    %1429 = vmatprep.subr.mxu0 0.0
    %1430 = vmatpush1.msra.mxu0 0.0
    %1431 = vmatprep.subr.mxu0 0.0
    %1432 = vmatpush1.msra.mxu0 0.0
    %1433 = vmatprep.subr.mxu0 0.0
    %1434 = vmatpush1.msra.mxu0 0.0
    %1435 = vmatprep.subr.mxu0 0.0
    %1436 = vmatpush1.msra.mxu0 0.0
    %1437 = vmatprep.subr.mxu0 0.0
    %1438 = vmatpush1.msra.mxu0 0.0
    %1439 = vmatprep.subr.mxu0 0.0
    %1440 = vmatpush1.msra.mxu0 0.0
    %1441 = vmatprep.subr.mxu0 0.0
    %1442 = vmatpush1.msra.mxu0 0.0
    %1443 = vmatprep.subr.mxu0 0.0
    %1444 = vmatpush1.msra.mxu0 0.0
    %1445 = vmatprep.subr.mxu0 0.0
    %1446 = vmatpush1.msra.mxu0 0.0
    %1447 = vmatprep.subr.mxu0 0.0
    %1448 = vmatpush1.msra.mxu0 0.0
    %1449 = vmatprep.subr.mxu0 0.0
    %1450 = vmatpush1.msra.mxu0 %v48
    %1451 = vmatprep.subr.mxu0 0.0
    %1452 = vmatpush1.msra.mxu0 %v47
    %1453 = vmatprep.subr.mxu0 0.0
    %1454 = vmatpush1.msra.mxu0 %v46
    %1455 = vmatprep.subr.mxu0 0.0
    %1456 = vmatpush1.msra.mxu0 %v45
    %1457 = vmatprep.subr.mxu0 0.0
    %1458 = vmatpush2.msra.mxu0 0.0
    %1459 = vmatprep.subr.mxu0 0.0
    %1460 = vmatpush2.msra.mxu0 0.0
    %1461 = vmatprep.subr.mxu0 0.0
    %1462 = vmatpush2.msra.mxu0 0.0
    %1463 = vmatprep.subr.mxu0 0.0
    %1464 = vmatpush2.msra.mxu0 0.0
    %1465 = vmatprep.subr.mxu0 0.0
    %1466 = vmatpush2.msra.mxu0 0.0
    %1467 = vmatprep.subr.mxu0 0.0
    %1468 = vmatpush2.msra.mxu0 0.0
    %1469 = vmatprep.subr.mxu0 0.0
    %1470 = vmatpush2.msra.mxu0 0.0
    %1471 = vmatprep.subr.mxu0 0.0
    %1472 = vmatpush2.msra.mxu0 0.0
    %1473 = vmatprep.subr.mxu0 0.0
    %1474 = vmatpush2.msra.mxu0 0.0
    %1475 = vmatprep.subr.mxu0 0.0
    %1476 = vmatpush2.msra.mxu0 0.0
    %1477 = vmatprep.subr.mxu0 0.0
    %1478 = vmatpush2.msra.mxu0 0.0
    %1479 = vmatprep.subr.mxu0 0.0
    %1480 = vmatpush2.msra.mxu0 0.0
    %1481 = vmatprep.subr.mxu0 0.0
    %1482 = vmatpush2.msra.mxu0 0.0
    %1483 = vmatprep.subr.mxu0 0.0
    %1484 = vmatpush2.msra.mxu0 0.0
    %1485 = vmatprep.subr.mxu0 0.0
    %1486 = vmatpush2.msra.mxu0 0.0
    %1487 = vmatprep.subr.mxu0 0.0
    %1488 = vmatpush2.msra.mxu0 0.0
    %1489 = vmatprep.mubr.f32.mxu0 0.0
    %1490 = vmatmul.mubr.f32.gmra.mxu0 %v1423
    %v1491 = vpop.f32.mrf.mxu0
    %v1492 = vadd.f32 %v49, %v1491
    %v1493 = vpop.f32.mrf.mxu0
    %1494 = vdwg.mxu0
    %1495 = vst [vmem:[%s2] sm:$0x1] %v1492
    // Predicated region
    $region18: #{forward.1} parent=1 // pred_check
      _
    $region19: #{forward.1} parent=1 // pred_check_branch
      %1497 = sbr.rel (0) target = $region21
    $region20: #{forward.1} parent=1 // pred_region
      _
    $region21: #{forward.1} parent=1 // pred_fallthru
      _
    // Predicated region
    $region22: #{forward.1} parent=1 // pred_check
      _
    $region23: #{forward.1} parent=1 // pred_check_branch
      %1499 = sbr.rel (0) target = $region25
    $region24: #{forward.1} parent=1 // pred_region
      _
    $region25: #{forward.1} parent=1 // pred_fallthru
      _
    %1500 = vsyncpa [#allocation3], 1
    %1501 = vsyncpa [#allocation5], 1

</llo_original>
